<compile_context>
chip_gen: v6e
topology: v6e:2x2x1
jax: 0.10.0
libtpu: 0.0.40
codegen_flags: <defaults>
</compile_context>

<pallas_src>
import jax
import jax.numpy as jnp
from jax.experimental import pallas as pl
from jax.experimental.pallas import tpu as pltpu

LEAKY_SLOPE = 0.01          # nn.LeakyReLU default negative_slope
F_DIM = 1024                # hidden_size (hard-coded 1024 in the batch_norm=False branch)
F_CHUNK = 256               # layer-3 output chunking (4 chunks of 256 columns)
OUT_DIM = 10                # adj_option="default"
M_CAP = 4096                # max flattened MXU M rows (TB*TN) per grid step

# (cin, cout) of every conv/linear layer in forward order.
_LAYER_DIMS = [(6, 64), (64, 128), (128, F_DIM), (F_DIM, 256), (256, 128), (128, OUT_DIM)]


def _leaky_relu(x):
    return jnp.where(x >= 0, x, LEAKY_SLOPE * x)


# ---------------------------------------------------------------------------
# Fused kernel: PointFeatCNN (three 1x1 convs + running-max pool) + head MLP
# ---------------------------------------------------------------------------
def pointnet_kernel(x_ref,             # (TB, TN, 6) f32 block of concatenated point clouds
                    w1, b1,            # Conv1d(6,64,1)      (f32)
                    w2, b2,            # Conv1d(64,128,1)    (w bf16, b f32)
                    w3, b3,            # Conv1d(128,1024,1)  (w bf16, b f32)
                    w4, b4,            # Linear(1024,256)    (w bf16, b f32)
                    w5, b5,            # Linear(256,128)     (w bf16, b f32)
                    w6, b6,            # Linear(128,10)      (w bf16, b f32)
                    o_ref,             # (TB, 1, OUT_DIM) f32 output block
                    acc_ref):          # (TB, F_DIM) f32 VMEM scratch: running max
    n_idx = pl.program_id(1)
    n_last = pl.num_programs(1) - 1

    @pl.when(n_idx == 0)
    def _init():
        acc_ref[...] = jnp.full(acc_ref.shape, -jnp.inf, dtype=acc_ref.dtype)

    TB, TN, _ = x_ref.shape
    M = TB * TN
    # Flatten (batch-tile, points-tile) -> MXU M dimension.  TN % 8 == 0, so the
    # collapse is sublane-tile aligned and layout preserving.
    x = x_ref[...].reshape(M, 6)                                     # [M, 6] f32

    # Conv1d(6,64,1) + LeakyReLU (channel-concat already folded into K=6).
    h = _leaky_relu(jnp.dot(x, w1[...], preferred_element_type=jnp.float32) + b1[...])

    # Conv1d(64,128,1) + LeakyReLU  (bf16 operands, f32 accumulate).
    h = _leaky_relu(jnp.dot(h.astype(jnp.bfloat16), w2[...],
                            preferred_element_type=jnp.float32) + b2[...])    # [M, 128]
    h_bf = h.astype(jnp.bfloat16)

    # Conv1d(128,1024,1) chunked over the 1024 output channels; bias b3 is hoisted
    # out of the per-point path (added once at finalize: max(h+b3) == max(h)+b3).
    for c in range(F_DIM // F_CHUNK):
        lo = c * F_CHUNK
        w3c = w3[:, lo:lo + F_CHUNK]                                 # static, lane-aligned
        h3 = jnp.dot(h_bf, w3c, preferred_element_type=jnp.float32)  # [M, F_CHUNK]
        # AdaptiveMaxPool1d(1) fused as a running max: first an elementwise max over
        # the TN/8 sublane groups (VPU), then a single 8-deep reduce (XLU).
        h3g = h3.reshape(TB, TN // 8, 8, F_CHUNK)
        gmax = jnp.max(h3g, axis=1)                                   # [TB, 8, F_CHUNK]
        tmax = jnp.max(gmax, axis=1)                                  # [TB, F_CHUNK]
        acc_ref[:, lo:lo + F_CHUNK] = jnp.maximum(acc_ref[:, lo:lo + F_CHUNK], tmax)

    # Head MLP (hidden_mlp) fused on the last points step.
    @pl.when(n_idx == n_last)
    def _head():
        f = (acc_ref[...] + b3[...]).astype(jnp.bfloat16)             # [TB, 1024]
        m = _leaky_relu(jnp.dot(f, w4[...], preferred_element_type=jnp.float32) + b4[...])
        m = _leaky_relu(jnp.dot(m.astype(jnp.bfloat16), w5[...],
                                preferred_element_type=jnp.float32) + b5[...])
        out = jnp.dot(m.astype(jnp.bfloat16), w6[...],
                      preferred_element_type=jnp.float32) + b6[...]    # [TB, 10]
        o_ref[...] = out.reshape(o_ref.shape)


# ---------------------------------------------------------------------------
# Host-side wrapper
# ---------------------------------------------------------------------------
def init_params(key):
    """Deterministic synthetic parameters.  Weights stored as [cin, cout]
    (already transposed relative to torch's [out, in]); biases as [1, cout]."""
    params = []
    for cin, cout in _LAYER_DIMS:
        key, kw, kb = jax.random.split(key, 3)
        w = jax.random.normal(kw, (cin, cout), jnp.float32) * (1.0 / jnp.sqrt(cin))
        b = jax.random.normal(kb, (1, cout), jnp.float32) * 0.01
        params += [w, b]
    return params


def _pick_tiles(B, N):
    assert N % 8 == 0, "number of points must be a multiple of 8 (sublane tiling)"
    # Batch tile: ensure >= 2 steps on the leading 'parallel' grid axis whenever
    # B >= 2 (v7x has 2 TensorCores); cap at 8.
    TB = B
    for cand in (8, 4, 2, 1):
        if cand <= B and B % cand == 0 and B // cand >= 2:
            TB = cand
            break
    # Points tile: largest divisor of N (multiple of 8) keeping TB*TN <= M_CAP.
    # 8 always divides N, so a valid fallback exists for awkward N.
    divisors = [d for d in range(8, N + 1, 8) if N % d == 0]
    fitting = [d for d in divisors if TB * d <= M_CAP]
    TN = max(fitting) if fitting else min(divisors)
    return TB, TN


def pointnet_forward(x, params):
    """x: [B, 2, N, 3] float32 -> [B, 10] float32."""
    B, two, N, three = x.shape
    assert two == 2 and three == 3
    w1, b1, w2, b2, w3, b3, w4, b4, w5, b5, w6, b6 = params

    bf = jnp.bfloat16
    # torch's cat([x1.T, x2.T], dim=1) over channels == concat along the xyz axis
    # in point-major layout -> one K=6 matmul in the kernel.
    x6 = jnp.concatenate([x[:, 0], x[:, 1]], axis=-1)                 # [B, N, 6] f32
    w2b, w3b = w2.astype(bf), w3.astype(bf)
    w4b, w5b, w6b = w4.astype(bf), w5.astype(bf), w6.astype(bf)

    TB, TN = _pick_tiles(B, N)
    assert B % TB == 0 and N % TN == 0
    grid = (B // TB, N // TN)

    const = lambda shape: pl.BlockSpec(shape, lambda b, n: (0,) * len(shape))
    out3 = pl.pallas_call(
        pointnet_kernel,
        out_shape=jax.ShapeDtypeStruct((B, 1, OUT_DIM), jnp.float32),
        grid_spec=pltpu.PrefetchScalarGridSpec(
            num_scalar_prefetch=0,
            grid=grid,
            in_specs=[
                pl.BlockSpec((TB, TN, 6), lambda b, n: (b, n, 0)),
                const((6, 64)), const((1, 64)),
                const((64, 128)), const((1, 128)),
                const((128, F_DIM)), const((1, F_DIM)),
                const((F_DIM, 256)), const((1, 256)),
                const((256, 128)), const((1, 128)),
                const((128, OUT_DIM)), const((1, OUT_DIM)),
            ],
            # Same block index across the points axis -> resident output; written
            # only on the last points step.
            out_specs=pl.BlockSpec((TB, 1, OUT_DIM), lambda b, n: (b, 0, 0)),
            scratch_shapes=[pltpu.VMEM((TB, F_DIM), jnp.float32)],
        ),
        compiler_params=pltpu.CompilerParams(
            dimension_semantics=("parallel", "arbitrary"),
            vmem_limit_bytes=40 * 1024 * 1024),
    )(x6, w1, b1, w2b, b2, w3b, b3, w4b, b4, w5b, b5, w6b, b6)

    return out3[:, 0, :]  # [B, 10]


def pointnet_reference(x, params):
    """Pure-JAX reference with the same precision choices (bf16 operands for the
    big matmuls, f32 accumulation) for the correctness check."""
    w1, b1, w2, b2, w3, b3, w4, b4, w5, b5, w6, b6 = params
    bf = jnp.bfloat16
    x6 = jnp.concatenate([x[:, 0], x[:, 1]], axis=-1)                    # [B, N, 6] f32
    h = _leaky_relu(jnp.dot(x6, w1, preferred_element_type=jnp.float32) + b1)
    h = _leaky_relu(jnp.dot(h.astype(bf), w2.astype(bf),
                            preferred_element_type=jnp.float32) + b2)
    h = jnp.dot(h.astype(bf), w3.astype(bf), preferred_element_type=jnp.float32) + b3
    f = jnp.max(h, axis=1)                                               # [B, 1024]
    m = _leaky_relu(jnp.dot(f.astype(bf), w4.astype(bf),
                            preferred_element_type=jnp.float32) + b4)
    m = _leaky_relu(jnp.dot(m.astype(bf), w5.astype(bf),
                            preferred_element_type=jnp.float32) + b5)
    return jnp.dot(m.astype(bf), w6.astype(bf), preferred_element_type=jnp.float32) + b6


if __name__ == "__main__":
    key = jax.random.PRNGKey(0)
    k_x, k_p = jax.random.split(key)

    B, N = 2, 16                       # batch=2, 16 points per cloud
    x = jax.random.normal(k_x, (B, 2, N, 3), dtype=jnp.float32)
    params = init_params(k_p)

    out = jax.block_until_ready(pointnet_forward(x, params))
    assert out.shape == (B, OUT_DIM), out.shape

    ref = pointnet_reference(x, params)
    assert jnp.allclose(out, ref, atol=1e-2, rtol=1e-2), (out, ref)

    # TODO(synk): the module's self.soft_max is defined but never used in forward(); not implemented.
    print("KERNEL_OK")
</pallas_src>

<mosaic_0001>
module attributes {stable_mosaic.version = 11 : i64} {
  func.func @pointnet_kernel(%arg0: i32, %arg1: i32, %arg2: memref<1x16x6xf32, #tpu.memory_space<vmem>>, %arg3: memref<6x64xf32, #tpu.memory_space<vmem>>, %arg4: memref<1x64xf32, #tpu.memory_space<vmem>>, %arg5: memref<64x128xbf16, #tpu.memory_space<vmem>>, %arg6: memref<1x128xf32, #tpu.memory_space<vmem>>, %arg7: memref<128x1024xbf16, #tpu.memory_space<vmem>>, %arg8: memref<1x1024xf32, #tpu.memory_space<vmem>>, %arg9: memref<1024x256xbf16, #tpu.memory_space<vmem>>, %arg10: memref<1x256xf32, #tpu.memory_space<vmem>>, %arg11: memref<256x128xbf16, #tpu.memory_space<vmem>>, %arg12: memref<1x128xf32, #tpu.memory_space<vmem>>, %arg13: memref<128x10xbf16, #tpu.memory_space<vmem>>, %arg14: memref<1x10xf32, #tpu.memory_space<vmem>>, %arg15: memref<1x1x10xf32, #tpu.memory_space<vmem>>, %arg16: memref<1x1024xf32, #tpu.memory_space<vmem>>) attributes {dimension_semantics = [#tpu.dimension_semantics<parallel>, #tpu.dimension_semantics<arbitrary>], iteration_bounds = array<i64: 2, 1>, scalar_prefetch = 0 : i64, scratch_operands = 1 : i64, tpu.core_type = #tpu.core_type<tc>, window_params = [{transform_indices = @transform_0, window_bounds = array<i64: 1, 16, 6>}, {pipeline_mode = #tpu.pipeline_mode<synchronous>, transform_indices = @transform_1, window_bounds = array<i64: 6, 64>}, {pipeline_mode = #tpu.pipeline_mode<synchronous>, transform_indices = @transform_2, window_bounds = array<i64: 1, 64>}, {pipeline_mode = #tpu.pipeline_mode<synchronous>, transform_indices = @transform_3, window_bounds = array<i64: 64, 128>}, {pipeline_mode = #tpu.pipeline_mode<synchronous>, transform_indices = @transform_4, window_bounds = array<i64: 1, 128>}, {pipeline_mode = #tpu.pipeline_mode<synchronous>, transform_indices = @transform_5, window_bounds = array<i64: 128, 1024>}, {pipeline_mode = #tpu.pipeline_mode<synchronous>, transform_indices = @transform_6, window_bounds = array<i64: 1, 1024>}, {pipeline_mode = #tpu.pipeline_mode<synchronous>, transform_indices = @transform_7, window_bounds = array<i64: 1024, 256>}, {pipeline_mode = #tpu.pipeline_mode<synchronous>, transform_indices = @transform_8, window_bounds = array<i64: 1, 256>}, {pipeline_mode = #tpu.pipeline_mode<synchronous>, transform_indices = @transform_9, window_bounds = array<i64: 256, 128>}, {pipeline_mode = #tpu.pipeline_mode<synchronous>, transform_indices = @transform_10, window_bounds = array<i64: 1, 128>}, {pipeline_mode = #tpu.pipeline_mode<synchronous>, transform_indices = @transform_11, window_bounds = array<i64: 128, 10>}, {pipeline_mode = #tpu.pipeline_mode<synchronous>, transform_indices = @transform_12, window_bounds = array<i64: 1, 10>}, {transform_indices = @transform_13, window_bounds = array<i64: 1, 1, 10>}]} {
    %c0_i32 = arith.constant 0 : i32
    %0 = arith.cmpi eq, %arg1, %c0_i32 : i32
    %1 = arith.extui %0 : i1 to i32
    %c0_i32_0 = arith.constant 0 : i32
    %2 = arith.cmpi ne, %1, %c0_i32_0 : i32
    scf.if %2 {
      %cst_51 = arith.constant 0xFF800000 : f32
      %62 = vector.broadcast %cst_51 : f32 to vector<1x1024xf32>
      %c0_52 = arith.constant 0 : index
      %c0_53 = arith.constant 0 : index
      %63 = vector.load %arg16[%c0_52, %c0_53] : memref<1x1024xf32, #tpu.memory_space<vmem>>, vector<1x1024xf32>
      tpu.vector_store %arg16[%c0_52, %c0_53], %62 {strides = array<i32>} : memref<1x1024xf32, #tpu.memory_space<vmem>>, vector<1x1024xf32>,
    } else {
    }
    %c0 = arith.constant 0 : index
    %c0_1 = arith.constant 0 : index
    %c0_2 = arith.constant 0 : index
    %3 = vector.load %arg2[%c0, %c0_1, %c0_2] : memref<1x16x6xf32, #tpu.memory_space<vmem>>, vector<1x16x6xf32>
    %4 = vector.shape_cast %3 : vector<1x16x6xf32> to vector<16x6xf32>
    %c0_3 = arith.constant 0 : index
    %c0_4 = arith.constant 0 : index
    %5 = vector.load %arg3[%c0_3, %c0_4] : memref<6x64xf32, #tpu.memory_space<vmem>>, vector<6x64xf32>
    %cst = arith.constant dense<0.000000e+00> : vector<16x64xf32>
    %6 = tpu.matmul %4, %5, %cst {dimension_numbers = #tpu.dot_dimension_numbers<[1], [0], [0], [1], [0, 0, 1, 1], [], []>} : vector<16x6xf32>, vector<6x64xf32>, vector<16x64xf32> -> vector<16x64xf32>
    %c0_5 = arith.constant 0 : index
    %c0_6 = arith.constant 0 : index
    %7 = vector.load %arg4[%c0_5, %c0_6] : memref<1x64xf32, #tpu.memory_space<vmem>>, vector<1x64xf32>
    %8 = vector.broadcast %7 : vector<1x64xf32> to vector<16x64xf32>
    %9 = arith.addf %6, %8 : vector<16x64xf32>
    %cst_7 = arith.constant 0.000000e+00 : f32
    %10 = vector.broadcast %cst_7 : f32 to vector<16x64xf32>
    %11 = arith.cmpf oge, %9, %10 : vector<16x64xf32>
    %cst_8 = arith.constant 0.00999999977 : f32
    %12 = vector.broadcast %cst_8 : f32 to vector<16x64xf32>
    %13 = arith.mulf %12, %9 : vector<16x64xf32>
    %14 = arith.select %11, %9, %13 : vector<16x64xi1>, vector<16x64xf32>
    %15 = arith.truncf %14 : vector<16x64xf32> to vector<16x64xbf16>
    %c0_9 = arith.constant 0 : index
    %c0_10 = arith.constant 0 : index
    %16 = vector.load %arg5[%c0_9, %c0_10] : memref<64x128xbf16, #tpu.memory_space<vmem>>, vector<64x128xbf16>
    %cst_11 = arith.constant dense<0.000000e+00> : vector<16x128xf32>
    %17 = tpu.matmul %15, %16, %cst_11 {dimension_numbers = #tpu.dot_dimension_numbers<[1], [0], [0], [1], [0, 0, 1, 1], [], []>} : vector<16x64xbf16>, vector<64x128xbf16>, vector<16x128xf32> -> vector<16x128xf32>
    %c0_12 = arith.constant 0 : index
    %c0_13 = arith.constant 0 : index
    %18 = vector.load %arg6[%c0_12, %c0_13] : memref<1x128xf32, #tpu.memory_space<vmem>>, vector<1x128xf32>
    %19 = vector.broadcast %18 : vector<1x128xf32> to vector<16x128xf32>
    %20 = arith.addf %17, %19 : vector<16x128xf32>
    %cst_14 = arith.constant 0.000000e+00 : f32
    %21 = vector.broadcast %cst_14 : f32 to vector<16x128xf32>
    %22 = arith.cmpf oge, %20, %21 : vector<16x128xf32>
    %cst_15 = arith.constant 0.00999999977 : f32
    %23 = vector.broadcast %cst_15 : f32 to vector<16x128xf32>
    %24 = arith.mulf %23, %20 : vector<16x128xf32>
    %25 = arith.select %22, %20, %24 : vector<16x128xi1>, vector<16x128xf32>
    %26 = arith.truncf %25 : vector<16x128xf32> to vector<16x128xbf16>
    %c0_16 = arith.constant 0 : index
    %c0_17 = arith.constant 0 : index
    %27 = vector.load %arg7[%c0_16, %c0_17] : memref<128x1024xbf16, #tpu.memory_space<vmem>>, vector<128x256xbf16>
    %cst_18 = arith.constant dense<0.000000e+00> : vector<16x256xf32>
    %28 = tpu.matmul %26, %27, %cst_18 {dimension_numbers = #tpu.dot_dimension_numbers<[1], [0], [0], [1], [0, 0, 1, 1], [], []>} : vector<16x128xbf16>, vector<128x256xbf16>, vector<16x256xf32> -> vector<16x256xf32>
    %29 = vector.shape_cast %28 : vector<16x256xf32> to vector<1x2x8x256xf32>
    %cst_19 = arith.constant dense<0xFF800000> : vector<1x8x256xf32>
    %30 = vector.multi_reduction <maximumf>, %29, %cst_19 [1] : vector<1x2x8x256xf32> to vector<1x8x256xf32>
    %cst_20 = arith.constant dense<0xFF800000> : vector<1x256xf32>
    %31 = vector.multi_reduction <maximumf>, %30, %cst_20 [1] : vector<1x8x256xf32> to vector<1x256xf32>
    %c0_21 = arith.constant 0 : index
    %c0_22 = arith.constant 0 : index
    %32 = vector.load %arg16[%c0_21, %c0_22] : memref<1x1024xf32, #tpu.memory_space<vmem>>, vector<1x256xf32>
    %33 = arith.maximumf %32, %31 : vector<1x256xf32>
    %c0_23 = arith.constant 0 : index
    %c0_24 = arith.constant 0 : index
    %34 = vector.load %arg16[%c0_23, %c0_24] : memref<1x1024xf32, #tpu.memory_space<vmem>>, vector<1x256xf32>
    tpu.vector_store %arg16[%c0_23, %c0_24], %33 {strides = array<i32>} : memref<1x1024xf32, #tpu.memory_space<vmem>>, vector<1x256xf32>,
    %c0_25 = arith.constant 0 : index
    %c256 = arith.constant 256 : index
    %35 = vector.load %arg7[%c0_25, %c256] : memref<128x1024xbf16, #tpu.memory_space<vmem>>, vector<128x256xbf16>
    %cst_26 = arith.constant dense<0.000000e+00> : vector<16x256xf32>
    %36 = tpu.matmul %26, %35, %cst_26 {dimension_numbers = #tpu.dot_dimension_numbers<[1], [0], [0], [1], [0, 0, 1, 1], [], []>} : vector<16x128xbf16>, vector<128x256xbf16>, vector<16x256xf32> -> vector<16x256xf32>
    %37 = vector.shape_cast %36 : vector<16x256xf32> to vector<1x2x8x256xf32>
    %cst_27 = arith.constant dense<0xFF800000> : vector<1x8x256xf32>
    %38 = vector.multi_reduction <maximumf>, %37, %cst_27 [1] : vector<1x2x8x256xf32> to vector<1x8x256xf32>
    %cst_28 = arith.constant dense<0xFF800000> : vector<1x256xf32>
    %39 = vector.multi_reduction <maximumf>, %38, %cst_28 [1] : vector<1x8x256xf32> to vector<1x256xf32>
    %c0_29 = arith.constant 0 : index
    %c256_30 = arith.constant 256 : index
    %40 = vector.load %arg16[%c0_29, %c256_30] : memref<1x1024xf32, #tpu.memory_space<vmem>>, vector<1x256xf32>
    %41 = arith.maximumf %40, %39 : vector<1x256xf32>
    %c0_31 = arith.constant 0 : index
    %c256_32 = arith.constant 256 : index
    %42 = vector.load %arg16[%c0_31, %c256_32] : memref<1x1024xf32, #tpu.memory_space<vmem>>, vector<1x256xf32>
    tpu.vector_store %arg16[%c0_31, %c256_32], %41 {strides = array<i32>} : memref<1x1024xf32, #tpu.memory_space<vmem>>, vector<1x256xf32>,
    %c0_33 = arith.constant 0 : index
    %c512 = arith.constant 512 : index
    %43 = vector.load %arg7[%c0_33, %c512] : memref<128x1024xbf16, #tpu.memory_space<vmem>>, vector<128x256xbf16>
    %cst_34 = arith.constant dense<0.000000e+00> : vector<16x256xf32>
    %44 = tpu.matmul %26, %43, %cst_34 {dimension_numbers = #tpu.dot_dimension_numbers<[1], [0], [0], [1], [0, 0, 1, 1], [], []>} : vector<16x128xbf16>, vector<128x256xbf16>, vector<16x256xf32> -> vector<16x256xf32>
    %45 = vector.shape_cast %44 : vector<16x256xf32> to vector<1x2x8x256xf32>
    %cst_35 = arith.constant dense<0xFF800000> : vector<1x8x256xf32>
    %46 = vector.multi_reduction <maximumf>, %45, %cst_35 [1] : vector<1x2x8x256xf32> to vector<1x8x256xf32>
    %cst_36 = arith.constant dense<0xFF800000> : vector<1x256xf32>
    %47 = vector.multi_reduction <maximumf>, %46, %cst_36 [1] : vector<1x8x256xf32> to vector<1x256xf32>
    %c0_37 = arith.constant 0 : index
    %c512_38 = arith.constant 512 : index
    %48 = vector.load %arg16[%c0_37, %c512_38] : memref<1x1024xf32, #tpu.memory_space<vmem>>, vector<1x256xf32>
    %49 = arith.maximumf %48, %47 : vector<1x256xf32>
    %c0_39 = arith.constant 0 : index
    %c512_40 = arith.constant 512 : index
    %50 = vector.load %arg16[%c0_39, %c512_40] : memref<1x1024xf32, #tpu.memory_space<vmem>>, vector<1x256xf32>
    tpu.vector_store %arg16[%c0_39, %c512_40], %49 {strides = array<i32>} : memref<1x1024xf32, #tpu.memory_space<vmem>>, vector<1x256xf32>,
    %c0_41 = arith.constant 0 : index
    %c768 = arith.constant 768 : index
    %51 = vector.load %arg7[%c0_41, %c768] : memref<128x1024xbf16, #tpu.memory_space<vmem>>, vector<128x256xbf16>
    %cst_42 = arith.constant dense<0.000000e+00> : vector<16x256xf32>
    %52 = tpu.matmul %26, %51, %cst_42 {dimension_numbers = #tpu.dot_dimension_numbers<[1], [0], [0], [1], [0, 0, 1, 1], [], []>} : vector<16x128xbf16>, vector<128x256xbf16>, vector<16x256xf32> -> vector<16x256xf32>
    %53 = vector.shape_cast %52 : vector<16x256xf32> to vector<1x2x8x256xf32>
    %cst_43 = arith.constant dense<0xFF800000> : vector<1x8x256xf32>
    %54 = vector.multi_reduction <maximumf>, %53, %cst_43 [1] : vector<1x2x8x256xf32> to vector<1x8x256xf32>
    %cst_44 = arith.constant dense<0xFF800000> : vector<1x256xf32>
    %55 = vector.multi_reduction <maximumf>, %54, %cst_44 [1] : vector<1x8x256xf32> to vector<1x256xf32>
    %c0_45 = arith.constant 0 : index
    %c768_46 = arith.constant 768 : index
    %56 = vector.load %arg16[%c0_45, %c768_46] : memref<1x1024xf32, #tpu.memory_space<vmem>>, vector<1x256xf32>
    %57 = arith.maximumf %56, %55 : vector<1x256xf32>
    %c0_47 = arith.constant 0 : index
    %c768_48 = arith.constant 768 : index
    %58 = vector.load %arg16[%c0_47, %c768_48] : memref<1x1024xf32, #tpu.memory_space<vmem>>, vector<1x256xf32>
    tpu.vector_store %arg16[%c0_47, %c768_48], %57 {strides = array<i32>} : memref<1x1024xf32, #tpu.memory_space<vmem>>, vector<1x256xf32>,
    %c0_i32_49 = arith.constant 0 : i32
    %59 = arith.cmpi eq, %arg1, %c0_i32_49 : i32
    %60 = arith.extui %59 : i1 to i32
    %c0_i32_50 = arith.constant 0 : i32
    %61 = arith.cmpi ne, %60, %c0_i32_50 : i32
    scf.if %61 {
      %c0_51 = arith.constant 0 : index
      %c0_52 = arith.constant 0 : index
      %62 = vector.load %arg16[%c0_51, %c0_52] : memref<1x1024xf32, #tpu.memory_space<vmem>>, vector<1x1024xf32>
      %c0_53 = arith.constant 0 : index
      %c0_54 = arith.constant 0 : index
      %63 = vector.load %arg8[%c0_53, %c0_54] : memref<1x1024xf32, #tpu.memory_space<vmem>>, vector<1x1024xf32>
      %64 = arith.addf %62, %63 : vector<1x1024xf32>
      %65 = arith.truncf %64 : vector<1x1024xf32> to vector<1x1024xbf16>
      %c0_55 = arith.constant 0 : index
      %c0_56 = arith.constant 0 : index
      %66 = vector.load %arg9[%c0_55, %c0_56] : memref<1024x256xbf16, #tpu.memory_space<vmem>>, vector<1024x256xbf16>
      %cst_57 = arith.constant dense<0.000000e+00> : vector<1x256xf32>
      %67 = tpu.matmul %65, %66, %cst_57 {dimension_numbers = #tpu.dot_dimension_numbers<[1], [0], [0], [1], [0, 0, 1, 1], [], []>} : vector<1x1024xbf16>, vector<1024x256xbf16>, vector<1x256xf32> -> vector<1x256xf32>
      %c0_58 = arith.constant 0 : index
      %c0_59 = arith.constant 0 : index
      %68 = vector.load %arg10[%c0_58, %c0_59] : memref<1x256xf32, #tpu.memory_space<vmem>>, vector<1x256xf32>
      %69 = arith.addf %67, %68 : vector<1x256xf32>
      %cst_60 = arith.constant 0.000000e+00 : f32
      %70 = vector.broadcast %cst_60 : f32 to vector<1x256xf32>
      %71 = arith.cmpf oge, %69, %70 : vector<1x256xf32>
      %cst_61 = arith.constant 0.00999999977 : f32
      %72 = vector.broadcast %cst_61 : f32 to vector<1x256xf32>
      %73 = arith.mulf %72, %69 : vector<1x256xf32>
      %74 = arith.select %71, %69, %73 : vector<1x256xi1>, vector<1x256xf32>
      %75 = arith.truncf %74 : vector<1x256xf32> to vector<1x256xbf16>
      %c0_62 = arith.constant 0 : index
      %c0_63 = arith.constant 0 : index
      %76 = vector.load %arg11[%c0_62, %c0_63] : memref<256x128xbf16, #tpu.memory_space<vmem>>, vector<256x128xbf16>
      %cst_64 = arith.constant dense<0.000000e+00> : vector<1x128xf32>
      %77 = tpu.matmul %75, %76, %cst_64 {dimension_numbers = #tpu.dot_dimension_numbers<[1], [0], [0], [1], [0, 0, 1, 1], [], []>} : vector<1x256xbf16>, vector<256x128xbf16>, vector<1x128xf32> -> vector<1x128xf32>
      %c0_65 = arith.constant 0 : index
      %c0_66 = arith.constant 0 : index
      %78 = vector.load %arg12[%c0_65, %c0_66] : memref<1x128xf32, #tpu.memory_space<vmem>>, vector<1x128xf32>
      %79 = arith.addf %77, %78 : vector<1x128xf32>
      %cst_67 = arith.constant 0.000000e+00 : f32
      %80 = vector.broadcast %cst_67 : f32 to vector<1x128xf32>
      %81 = arith.cmpf oge, %79, %80 : vector<1x128xf32>
      %cst_68 = arith.constant 0.00999999977 : f32
      %82 = vector.broadcast %cst_68 : f32 to vector<1x128xf32>
      %83 = arith.mulf %82, %79 : vector<1x128xf32>
      %84 = arith.select %81, %79, %83 : vector<1x128xi1>, vector<1x128xf32>
      %85 = arith.truncf %84 : vector<1x128xf32> to vector<1x128xbf16>
      %c0_69 = arith.constant 0 : index
      %c0_70 = arith.constant 0 : index
      %86 = vector.load %arg13[%c0_69, %c0_70] : memref<128x10xbf16, #tpu.memory_space<vmem>>, vector<128x10xbf16>
      %cst_71 = arith.constant dense<0.000000e+00> : vector<1x10xf32>
      %87 = tpu.matmul %85, %86, %cst_71 {dimension_numbers = #tpu.dot_dimension_numbers<[1], [0], [0], [1], [0, 0, 1, 1], [], []>} : vector<1x128xbf16>, vector<128x10xbf16>, vector<1x10xf32> -> vector<1x10xf32>
      %c0_72 = arith.constant 0 : index
      %c0_73 = arith.constant 0 : index
      %88 = vector.load %arg14[%c0_72, %c0_73] : memref<1x10xf32, #tpu.memory_space<vmem>>, vector<1x10xf32>
      %89 = arith.addf %87, %88 : vector<1x10xf32>
      %90 = vector.shape_cast %89 : vector<1x10xf32> to vector<1x1x10xf32>
      %c0_74 = arith.constant 0 : index
      %c0_75 = arith.constant 0 : index
      %c0_76 = arith.constant 0 : index
      %91 = vector.load %arg15[%c0_74, %c0_75, %c0_76] : memref<1x1x10xf32, #tpu.memory_space<vmem>>, vector<1x1x10xf32>
      tpu.vector_store %arg15[%c0_74, %c0_75, %c0_76], %90 {strides = array<i32>} : memref<1x1x10xf32, #tpu.memory_space<vmem>>, vector<1x1x10xf32>,
    } else {
    }
    return
  }
  func.func @transform_0(%arg0: i32, %arg1: i32) -> (i32, i32, i32) {
    %c0_i32 = arith.constant 0 : i32
    %c0_i32_0 = arith.constant 0 : i32
    return %arg0, %arg1, %c0_i32 : i32, i32, i32
  }
  func.func @transform_1(%arg0: i32, %arg1: i32) -> (i32, i32) {
    %c0_i32 = arith.constant 0 : i32
    %c0_i32_0 = arith.constant 0 : i32
    %c0_i32_1 = arith.constant 0 : i32
    return %c0_i32, %c0_i32_0 : i32, i32
  }
  func.func @transform_2(%arg0: i32, %arg1: i32) -> (i32, i32) {
    %c0_i32 = arith.constant 0 : i32
    %c0_i32_0 = arith.constant 0 : i32
    %c0_i32_1 = arith.constant 0 : i32
    return %c0_i32, %c0_i32_0 : i32, i32
  }
  func.func @transform_3(%arg0: i32, %arg1: i32) -> (i32, i32) {
    %c0_i32 = arith.constant 0 : i32
    %c0_i32_0 = arith.constant 0 : i32
    %c0_i32_1 = arith.constant 0 : i32
    return %c0_i32, %c0_i32_0 : i32, i32
  }
  func.func @transform_4(%arg0: i32, %arg1: i32) -> (i32, i32) {
    %c0_i32 = arith.constant 0 : i32
    %c0_i32_0 = arith.constant 0 : i32
    %c0_i32_1 = arith.constant 0 : i32
    return %c0_i32, %c0_i32_0 : i32, i32
  }
  func.func @transform_5(%arg0: i32, %arg1: i32) -> (i32, i32) {
    %c0_i32 = arith.constant 0 : i32
    %c0_i32_0 = arith.constant 0 : i32
    %c0_i32_1 = arith.constant 0 : i32
    return %c0_i32, %c0_i32_0 : i32, i32
  }
  func.func @transform_6(%arg0: i32, %arg1: i32) -> (i32, i32) {
    %c0_i32 = arith.constant 0 : i32
    %c0_i32_0 = arith.constant 0 : i32
    %c0_i32_1 = arith.constant 0 : i32
    return %c0_i32, %c0_i32_0 : i32, i32
  }
  func.func @transform_7(%arg0: i32, %arg1: i32) -> (i32, i32) {
    %c0_i32 = arith.constant 0 : i32
    %c0_i32_0 = arith.constant 0 : i32
    %c0_i32_1 = arith.constant 0 : i32
    return %c0_i32, %c0_i32_0 : i32, i32
  }
  func.func @transform_8(%arg0: i32, %arg1: i32) -> (i32, i32) {
    %c0_i32 = arith.constant 0 : i32
    %c0_i32_0 = arith.constant 0 : i32
    %c0_i32_1 = arith.constant 0 : i32
    return %c0_i32, %c0_i32_0 : i32, i32
  }
  func.func @transform_9(%arg0: i32, %arg1: i32) -> (i32, i32) {
    %c0_i32 = arith.constant 0 : i32
    %c0_i32_0 = arith.constant 0 : i32
    %c0_i32_1 = arith.constant 0 : i32
    return %c0_i32, %c0_i32_0 : i32, i32
  }
  func.func @transform_10(%arg0: i32, %arg1: i32) -> (i32, i32) {
    %c0_i32 = arith.constant 0 : i32
    %c0_i32_0 = arith.constant 0 : i32
    %c0_i32_1 = arith.constant 0 : i32
    return %c0_i32, %c0_i32_0 : i32, i32
  }
  func.func @transform_11(%arg0: i32, %arg1: i32) -> (i32, i32) {
    %c0_i32 = arith.constant 0 : i32
    %c0_i32_0 = arith.constant 0 : i32
    %c0_i32_1 = arith.constant 0 : i32
    return %c0_i32, %c0_i32_0 : i32, i32
  }
  func.func @transform_12(%arg0: i32, %arg1: i32) -> (i32, i32) {
    %c0_i32 = arith.constant 0 : i32
    %c0_i32_0 = arith.constant 0 : i32
    %c0_i32_1 = arith.constant 0 : i32
    return %c0_i32, %c0_i32_0 : i32, i32
  }
  func.func @transform_13(%arg0: i32, %arg1: i32) -> (i32, i32, i32) {
    %c0_i32 = arith.constant 0 : i32
    %c0_i32_0 = arith.constant 0 : i32
    %c0_i32_1 = arith.constant 0 : i32
    return %arg0, %c0_i32, %c0_i32_0 : i32, i32, i32
  }
}

</mosaic_0001>

<llo_original>
// kernel: tpu_custom_call.1
$region0: #{tpu_custom_call.1}
  #allocation0 [shape = 'u32[]', space=smem, size = 0x4, offset = 0x4, fixed_abs, tag = 'smem constant byte address 0x4 - core index']
  #allocation1 [shape = 'u32[144,128]{1,0:T(1,128)}', space=vmem, size = 0x12000, scoped, tag = 'internal scratch']
  #allocation2 [shape = 'f32[1,1024]{1,0:T(1,128)}', space=vmem, size = 0x1000, scoped, tag = 'scratch operand']
  %s0 = inlined_call_operand.vmem [shape: f32[2,16,6], index: 0, kind: input, shape index: {}]
  %s1 = inlined_call_operand.hbm [shape: f32[6,64], index: 1, kind: input, shape index: {}]
  %s2 = inlined_call_operand.hbm [shape: f32[1,64], index: 2, kind: input, shape index: {}]
  %s3 = inlined_call_operand.hbm [shape: bf16[64,128], index: 3, kind: input, shape index: {}]
  %s4 = inlined_call_operand.hbm [shape: f32[1,128], index: 4, kind: input, shape index: {}]
  %s5 = inlined_call_operand.hbm [shape: bf16[128,1024], index: 5, kind: input, shape index: {}]
  %s6 = inlined_call_operand.hbm [shape: f32[1,1024], index: 6, kind: input, shape index: {}]
  %s7 = inlined_call_operand.hbm [shape: bf16[1024,256], index: 7, kind: input, shape index: {}]
  %s8 = inlined_call_operand.hbm [shape: f32[1,256], index: 8, kind: input, shape index: {}]
  %s9 = inlined_call_operand.vmem [shape: bf16[256,128], index: 9, kind: input, shape index: {}]
  %s10 = inlined_call_operand.hbm [shape: f32[1,128], index: 10, kind: input, shape index: {}]
  %s11 = inlined_call_operand.vmem [shape: bf16[128,10], index: 11, kind: input, shape index: {}]
  %s12 = inlined_call_operand.vmem [shape: f32[1,10], index: 12, kind: input, shape index: {}]
  %s13 = inlined_call_operand.hbm [shape: f32[2,1,10], index: 13, kind: output, shape index: {}]
  %s14 = sld [smem:[#allocation0]]
  $region129: #{tpu_custom_call.1} parent=0
    _
  %s16 = ssub.s32 1, %s14
  %s17 = scalar_select 0, %s16, %s14
  $region1: #{tpu_custom_call.1} parent=0
    #allocation3 [shape = 'u8[4096]{0}', space=vmem, size = 0x1000, scoped, tag = 'input window, operand 1, single buffered']
    #allocation4 [shape = 's32[2]{0}', space=sflag, size = 0x8, scoped, tag = 'scoped memory for tpu_custom_call.1']
    #allocation5 [shape = 's32[2]{0}', space=sflag, size = 0x8, scoped, tag = 'scoped memory for tpu_custom_call.1']
    #allocation6 [shape = 'u8[512]{0}', space=vmem, size = 0x400, scoped, tag = 'input window, operand 2, single buffered']
    #allocation7 [shape = 's32[1]{0}', space=sflag, size = 0x4, scoped, tag = 'scoped memory for tpu_custom_call.1']
    #allocation8 [shape = 'u8[16384]{0}', space=vmem, size = 0x4000, scoped, tag = 'input window, operand 3, single buffered']
    #allocation9 [shape = 'u8[512]{0}', space=vmem, size = 0x400, scoped, tag = 'input window, operand 4, single buffered']
    #allocation10 [shape = 's32[1]{0}', space=sflag, size = 0x4, scoped, tag = 'scoped memory for tpu_custom_call.1']
    #allocation11 [shape = 'u8[262144]{0}', space=vmem, size = 0x40000, scoped, tag = 'input window, operand 5, single buffered']
    #allocation12 [shape = 'u8[4096]{0}', space=vmem, size = 0x1000, scoped, tag = 'input window, operand 6, single buffered']
    #allocation13 [shape = 's32[1]{0}', space=sflag, size = 0x4, scoped, tag = 'scoped memory for tpu_custom_call.1']
    #allocation14 [shape = 'u8[524288]{0}', space=vmem, size = 0x80000, scoped, tag = 'input window, operand 7, single buffered']
    #allocation15 [shape = 'u8[1024]{0}', space=vmem, size = 0x400, scoped, tag = 'input window, operand 8, single buffered']
    #allocation16 [shape = 's32[1]{0}', space=sflag, size = 0x4, scoped, tag = 'scoped memory for tpu_custom_call.1']
    #allocation17 [shape = 'u8[512]{0}', space=vmem, size = 0x400, scoped, tag = 'input window, operand 10, single buffered']
    #allocation18 [shape = 'u8[1024]{0}', space=vmem, size = 0x400, scoped, tag = 'output window, operand 0']
    %18 = vsyncpa [#allocation4], 0
    %19 = vsyncpa [#allocation7], 0
    %20 = vsyncpa [#allocation10], 0
    %21 = vsyncpa [#allocation13], 0
    %22 = vsyncpa [#allocation16], 0
    %23 = vsyncpa [#allocation5], 0
    %s24 = scalar_lea.sflag [#allocation5], 1
    %25 = vsyncpa %s24, 0
    loop: start=0, step=1, limit=4
    $region2: #{tpu_custom_call.1} parent=1 // loop_pre_header
      _
    $region3: #{tpu_custom_call.1} parent=1 // loop_header
      %s27 = sphi 0, %s31
      %p28 = scmp.ge.s32.totalorder %s27, 4
      %s34 = sphi 0, %s46
      %s35 = sphi 0, %s42
      %s36 = sphi 0, %s34
      %s37 = sphi 0, %s35
      %s38 = sphi 0, %s36
      %s39 = sphi 0, %s37
      %s51 = sphi 0, %s53
      %s54 = sphi 0, %s51
      %s55 = sphi 0, %s54
      %s71 = sphi 0, %s55
      %s75 = sphi 0, %s75
      %s77 = sphi 0, %s75
      %s78 = sphi 0, %s77
      %s92 = sphi 0, %s78
      %s96 = sphi 0, %s96
      %s98 = sphi 0, %s96
      %s99 = sphi 0, %s98
      %s113 = sphi 0, %s99
      %s117 = sphi 0, %s117
      %s119 = sphi 0, %s117
      %s120 = sphi 0, %s119
      %s134 = sphi 0, %s120
      %s138 = sphi 0, %s138
      %s140 = sphi 0, %s138
      %s141 = sphi 0, %s140
      %s155 = sphi 0, %s141
      %s159 = sphi 0, %s159
      %s161 = sphi 0, %s159
      %s162 = sphi 0, %s161
      %s176 = sphi 0, %s162
      %s180 = sphi 0, %s180
      %s182 = sphi 0, %s180
      %s183 = sphi 0, %s182
      %s197 = sphi 0, %s183
      %s201 = sphi 0, %s201
      %s203 = sphi 0, %s201
      %s204 = sphi 0, %s203
      %s218 = sphi 0, %s204
      %s222 = sphi 0, %s222
      %s224 = sphi 0, %s222
      %s225 = sphi 0, %s224
      %s239 = sphi 0, %s225
      %s243 = sphi 0, %s243
      %s245 = sphi 0, %s243
      %s246 = sphi 0, %s245
      %s260 = sphi 0, %s246
      %s264 = sphi 0, %s264
      %s266 = sphi 0, %s264
      %s267 = sphi 0, %s266
      %s281 = sphi 0, %s267
      %s285 = sphi 0, %s285
      %s287 = sphi 0, %s285
      %s288 = sphi 0, %s287
      %s302 = sphi 0, %s288
      %s306 = sphi 0, %s306
      %s308 = sphi 0, %s306
      %s309 = sphi 0, %s308
      %s323 = sphi 0, %s309
      %s329 = sphi 0, %s331
      %s332 = sphi 0, %s329
      %s333 = sphi 0, %s332
      %s349 = sphi 0, %s333
    $region4: #{tpu_custom_call.1} parent=1 // loop_header_branch
      %30 = sbr.rel (%p28) target = $region8
    $region5: #{tpu_custom_call.1} parent=1 // loop_body
      %s32 = ssub.s32 %s27, 1
      %s33 = ssub.s32 %s27, 2
      %s40 = sadd.s32 1, %s35
      %p41 = scmp.ge.s32.totalorder %s40, 1
      %s42 = scalar_select %p41, 0, %s40
      %s43 = sadd.s32 1, %s34
      %s44 = scalar_select %p41, %s43, %s34
      %p45 = scmp.ge.s32.totalorder %s44, 2
      %s46 = scalar_select %p45, 0, %s44
      %s47 = ssub.s32 %s34, %s46
      %s48 = ssub.s32 %s35, %s42
      %s49 = sor.u32 %s47, %s48
      %p50 = scmp.eq.s32.totalorder %s49, 0
      %s52 = sadd.s32 %s51, 1
      %s53 = scalar_select %p50, %s51, %s52
      %p56 = pneg %p50
      %p57 = scmp.eq.s32.totalorder %s27, 1
      %p58 = por %p56, %p57
      %p59 = scmp.ne.s32.totalorder %s51, %s54
      %p60 = scmp.eq.s32.totalorder %s27, 0
      %p61 = por %p59, %p60
      %p62 = scmp.ne.s32.totalorder %s51, %s54
      %p63 = scmp.eq.s32.totalorder %s32, 1
      %p64 = por %p62, %p63
      %p65 = scmp.ne.s32.totalorder %s54, %s55
      %p66 = scmp.eq.s32.totalorder %s32, 0
      %p67 = por %p65, %p66
      %p68 = scmp.ne.s32.totalorder %s54, %s55
      %p69 = scmp.eq.s32.totalorder %s33, 1
      %p70 = por %p68, %p69
      %p72 = scmp.ne.s32.totalorder %s55, %s71
      %p73 = scmp.eq.s32.totalorder %s33, 0
      %p74 = por %p72, %p73
      %s76 = sadd.s32 %s75, 1
      %p79 = scmp.eq.s32.totalorder %s27, 1
      %p80 = scmp.ne.s32.totalorder %s75, %s77
      %p81 = scmp.eq.s32.totalorder %s27, 0
      %p82 = por %p80, %p81
      %p83 = scmp.ne.s32.totalorder %s75, %s77
      %p84 = scmp.eq.s32.totalorder %s32, 1
      %p85 = por %p83, %p84
      %p86 = scmp.ne.s32.totalorder %s77, %s78
      %p87 = scmp.eq.s32.totalorder %s32, 0
      %p88 = por %p86, %p87
      %p89 = scmp.ne.s32.totalorder %s77, %s78
      %p90 = scmp.eq.s32.totalorder %s33, 1
      %p91 = por %p89, %p90
      %p93 = scmp.ne.s32.totalorder %s78, %s92
      %p94 = scmp.eq.s32.totalorder %s33, 0
      %p95 = por %p93, %p94
      %s97 = sadd.s32 %s96, 1
      %p100 = scmp.eq.s32.totalorder %s27, 1
      %p101 = scmp.ne.s32.totalorder %s96, %s98
      %p102 = scmp.eq.s32.totalorder %s27, 0
      %p103 = por %p101, %p102
      %p104 = scmp.ne.s32.totalorder %s96, %s98
      %p105 = scmp.eq.s32.totalorder %s32, 1
      %p106 = por %p104, %p105
      %p107 = scmp.ne.s32.totalorder %s98, %s99
      %p108 = scmp.eq.s32.totalorder %s32, 0
      %p109 = por %p107, %p108
      %p110 = scmp.ne.s32.totalorder %s98, %s99
      %p111 = scmp.eq.s32.totalorder %s33, 1
      %p112 = por %p110, %p111
      %p114 = scmp.ne.s32.totalorder %s99, %s113
      %p115 = scmp.eq.s32.totalorder %s33, 0
      %p116 = por %p114, %p115
      %s118 = sadd.s32 %s117, 1
      %p121 = scmp.eq.s32.totalorder %s27, 1
      %p122 = scmp.ne.s32.totalorder %s117, %s119
      %p123 = scmp.eq.s32.totalorder %s27, 0
      %p124 = por %p122, %p123
      %p125 = scmp.ne.s32.totalorder %s117, %s119
      %p126 = scmp.eq.s32.totalorder %s32, 1
      %p127 = por %p125, %p126
      %p128 = scmp.ne.s32.totalorder %s119, %s120
      %p129 = scmp.eq.s32.totalorder %s32, 0
      %p130 = por %p128, %p129
      %p131 = scmp.ne.s32.totalorder %s119, %s120
      %p132 = scmp.eq.s32.totalorder %s33, 1
      %p133 = por %p131, %p132
      %p135 = scmp.ne.s32.totalorder %s120, %s134
      %p136 = scmp.eq.s32.totalorder %s33, 0
      %p137 = por %p135, %p136
      %s139 = sadd.s32 %s138, 1
      %p142 = scmp.eq.s32.totalorder %s27, 1
      %p143 = scmp.ne.s32.totalorder %s138, %s140
      %p144 = scmp.eq.s32.totalorder %s27, 0
      %p145 = por %p143, %p144
      %p146 = scmp.ne.s32.totalorder %s138, %s140
      %p147 = scmp.eq.s32.totalorder %s32, 1
      %p148 = por %p146, %p147
      %p149 = scmp.ne.s32.totalorder %s140, %s141
      %p150 = scmp.eq.s32.totalorder %s32, 0
      %p151 = por %p149, %p150
      %p152 = scmp.ne.s32.totalorder %s140, %s141
      %p153 = scmp.eq.s32.totalorder %s33, 1
      %p154 = por %p152, %p153
      %p156 = scmp.ne.s32.totalorder %s141, %s155
      %p157 = scmp.eq.s32.totalorder %s33, 0
      %p158 = por %p156, %p157
      %s160 = sadd.s32 %s159, 1
      %p163 = scmp.eq.s32.totalorder %s27, 1
      %p164 = scmp.ne.s32.totalorder %s159, %s161
      %p165 = scmp.eq.s32.totalorder %s27, 0
      %p166 = por %p164, %p165
      %p167 = scmp.ne.s32.totalorder %s159, %s161
      %p168 = scmp.eq.s32.totalorder %s32, 1
      %p169 = por %p167, %p168
      %p170 = scmp.ne.s32.totalorder %s161, %s162
      %p171 = scmp.eq.s32.totalorder %s32, 0
      %p172 = por %p170, %p171
      %p173 = scmp.ne.s32.totalorder %s161, %s162
      %p174 = scmp.eq.s32.totalorder %s33, 1
      %p175 = por %p173, %p174
      %p177 = scmp.ne.s32.totalorder %s162, %s176
      %p178 = scmp.eq.s32.totalorder %s33, 0
      %p179 = por %p177, %p178
      %s181 = sadd.s32 %s180, 1
      %p184 = scmp.eq.s32.totalorder %s27, 1
      %p185 = scmp.ne.s32.totalorder %s180, %s182
      %p186 = scmp.eq.s32.totalorder %s27, 0
      %p187 = por %p185, %p186
      %p188 = scmp.ne.s32.totalorder %s180, %s182
      %p189 = scmp.eq.s32.totalorder %s32, 1
      %p190 = por %p188, %p189
      %p191 = scmp.ne.s32.totalorder %s182, %s183
      %p192 = scmp.eq.s32.totalorder %s32, 0
      %p193 = por %p191, %p192
      %p194 = scmp.ne.s32.totalorder %s182, %s183
      %p195 = scmp.eq.s32.totalorder %s33, 1
      %p196 = por %p194, %p195
      %p198 = scmp.ne.s32.totalorder %s183, %s197
      %p199 = scmp.eq.s32.totalorder %s33, 0
      %p200 = por %p198, %p199
      %s202 = sadd.s32 %s201, 1
      %p205 = scmp.eq.s32.totalorder %s27, 1
      %p206 = scmp.ne.s32.totalorder %s201, %s203
      %p207 = scmp.eq.s32.totalorder %s27, 0
      %p208 = por %p206, %p207
      %p209 = scmp.ne.s32.totalorder %s201, %s203
      %p210 = scmp.eq.s32.totalorder %s32, 1
      %p211 = por %p209, %p210
      %p212 = scmp.ne.s32.totalorder %s203, %s204
      %p213 = scmp.eq.s32.totalorder %s32, 0
      %p214 = por %p212, %p213
      %p215 = scmp.ne.s32.totalorder %s203, %s204
      %p216 = scmp.eq.s32.totalorder %s33, 1
      %p217 = por %p215, %p216
      %p219 = scmp.ne.s32.totalorder %s204, %s218
      %p220 = scmp.eq.s32.totalorder %s33, 0
      %p221 = por %p219, %p220
      %s223 = sadd.s32 %s222, 1
      %p226 = scmp.eq.s32.totalorder %s27, 1
      %p227 = scmp.ne.s32.totalorder %s222, %s224
      %p228 = scmp.eq.s32.totalorder %s27, 0
      %p229 = por %p227, %p228
      %p230 = scmp.ne.s32.totalorder %s222, %s224
      %p231 = scmp.eq.s32.totalorder %s32, 1
      %p232 = por %p230, %p231
      %p233 = scmp.ne.s32.totalorder %s224, %s225
      %p234 = scmp.eq.s32.totalorder %s32, 0
      %p235 = por %p233, %p234
      %p236 = scmp.ne.s32.totalorder %s224, %s225
      %p237 = scmp.eq.s32.totalorder %s33, 1
      %p238 = por %p236, %p237
      %p240 = scmp.ne.s32.totalorder %s225, %s239
      %p241 = scmp.eq.s32.totalorder %s33, 0
      %p242 = por %p240, %p241
      %s244 = sadd.s32 %s243, 1
      %p247 = scmp.eq.s32.totalorder %s27, 1
      %p248 = scmp.ne.s32.totalorder %s243, %s245
      %p249 = scmp.eq.s32.totalorder %s27, 0
      %p250 = por %p248, %p249
      %p251 = scmp.ne.s32.totalorder %s243, %s245
      %p252 = scmp.eq.s32.totalorder %s32, 1
      %p253 = por %p251, %p252
      %p254 = scmp.ne.s32.totalorder %s245, %s246
      %p255 = scmp.eq.s32.totalorder %s32, 0
      %p256 = por %p254, %p255
      %p257 = scmp.ne.s32.totalorder %s245, %s246
      %p258 = scmp.eq.s32.totalorder %s33, 1
      %p259 = por %p257, %p258
      %p261 = scmp.ne.s32.totalorder %s246, %s260
      %p262 = scmp.eq.s32.totalorder %s33, 0
      %p263 = por %p261, %p262
      %s265 = sadd.s32 %s264, 1
      %p268 = scmp.eq.s32.totalorder %s27, 1
      %p269 = scmp.ne.s32.totalorder %s264, %s266
      %p270 = scmp.eq.s32.totalorder %s27, 0
      %p271 = por %p269, %p270
      %p272 = scmp.ne.s32.totalorder %s264, %s266
      %p273 = scmp.eq.s32.totalorder %s32, 1
      %p274 = por %p272, %p273
      %p275 = scmp.ne.s32.totalorder %s266, %s267
      %p276 = scmp.eq.s32.totalorder %s32, 0
      %p277 = por %p275, %p276
      %p278 = scmp.ne.s32.totalorder %s266, %s267
      %p279 = scmp.eq.s32.totalorder %s33, 1
      %p280 = por %p278, %p279
      %p282 = scmp.ne.s32.totalorder %s267, %s281
      %p283 = scmp.eq.s32.totalorder %s33, 0
      %p284 = por %p282, %p283
      %s286 = sadd.s32 %s285, 1
      %p289 = scmp.eq.s32.totalorder %s27, 1
      %p290 = scmp.ne.s32.totalorder %s285, %s287
      %p291 = scmp.eq.s32.totalorder %s27, 0
      %p292 = por %p290, %p291
      %p293 = scmp.ne.s32.totalorder %s285, %s287
      %p294 = scmp.eq.s32.totalorder %s32, 1
      %p295 = por %p293, %p294
      %p296 = scmp.ne.s32.totalorder %s287, %s288
      %p297 = scmp.eq.s32.totalorder %s32, 0
      %p298 = por %p296, %p297
      %p299 = scmp.ne.s32.totalorder %s287, %s288
      %p300 = scmp.eq.s32.totalorder %s33, 1
      %p301 = por %p299, %p300
      %p303 = scmp.ne.s32.totalorder %s288, %s302
      %p304 = scmp.eq.s32.totalorder %s33, 0
      %p305 = por %p303, %p304
      %s307 = sadd.s32 %s306, 1
      %p310 = scmp.eq.s32.totalorder %s27, 1
      %p311 = scmp.ne.s32.totalorder %s306, %s308
      %p312 = scmp.eq.s32.totalorder %s27, 0
      %p313 = por %p311, %p312
      %p314 = scmp.ne.s32.totalorder %s306, %s308
      %p315 = scmp.eq.s32.totalorder %s32, 1
      %p316 = por %p314, %p315
      %p317 = scmp.ne.s32.totalorder %s308, %s309
      %p318 = scmp.eq.s32.totalorder %s32, 0
      %p319 = por %p317, %p318
      %p320 = scmp.ne.s32.totalorder %s308, %s309
      %p321 = scmp.eq.s32.totalorder %s33, 1
      %p322 = por %p320, %p321
      %p324 = scmp.ne.s32.totalorder %s309, %s323
      %p325 = scmp.eq.s32.totalorder %s33, 0
      %p326 = por %p324, %p325
      %s327 = ssub.s32 %s34, %s46
      %p328 = scmp.eq.s32.totalorder %s327, 0
      %s330 = sadd.s32 %s329, 1
      %s331 = scalar_select %p328, %s329, %s330
      %p334 = pneg %p328
      %p335 = scmp.eq.s32.totalorder %s27, 1
      %p336 = por %p334, %p335
      %p337 = scmp.ne.s32.totalorder %s329, %s332
      %p338 = scmp.eq.s32.totalorder %s27, 0
      %p339 = por %p337, %p338
      %p340 = scmp.ne.s32.totalorder %s329, %s332
      %p341 = scmp.eq.s32.totalorder %s32, 1
      %p342 = por %p340, %p341
      %p343 = scmp.ne.s32.totalorder %s332, %s333
      %p344 = scmp.eq.s32.totalorder %s32, 0
      %p345 = por %p343, %p344
      %p346 = scmp.ne.s32.totalorder %s332, %s333
      %p347 = scmp.eq.s32.totalorder %s33, 1
      %p348 = por %p346, %p347
      %p350 = scmp.ne.s32.totalorder %s333, %s349
      %p351 = scmp.eq.s32.totalorder %s33, 0
      %p352 = por %p350, %p351
      %p353 = scmp.le.s32.totalorder 1, %s27
      %p354 = scmp.lt.s32.totalorder %s27, 3
      %p355 = pnand %p353, %p354
      %p356 = pneg %p355
      // Predicated region
      $region9: #{tpu_custom_call.1} parent=5 // pred_check
        _
      $region10: #{tpu_custom_call.1} parent=5 // pred_check_branch
        %358 = sbr.rel (%p355) target = $region12
      $region11: #{tpu_custom_call.1} parent=5 // pred_region
        %s359 = ssub.s32 %s27, 1
        // Predicated region
        $region13: #{tpu_custom_call.1} parent=11 // pred_check
          %p360 = pneg %p88
        $region14: #{tpu_custom_call.1} parent=11 // pred_check_branch
          %362 = sbr.rel (%p360) target = $region16
        $region15: #{tpu_custom_call.1} parent=11 // pred_region
          %s364 = ssub.s32 128, 128
          %365 = vsyncadd [#allocation4], %s364
          %s367 = sshll.u32 [#allocation3], 4
          %s368 = int_to_ptr.vmem [resolvable:$true] %s367
          %370 = dma.hbm_to_vmem [thread:$0]  %s1, 128, %s368, [#allocation4]
        $region16: #{tpu_custom_call.1} parent=11 // pred_fallthru
          _
        // Predicated region
        $region17: #{tpu_custom_call.1} parent=11 // pred_check
          %p371 = pneg %p109
        $region18: #{tpu_custom_call.1} parent=11 // pred_check_branch
          %373 = sbr.rel (%p371) target = $region20
        $region19: #{tpu_custom_call.1} parent=11 // pred_region
          %s375 = ssub.s32 16, 16
          %376 = vsyncadd [#allocation7], %s375
          %s378 = sshll.u32 [#allocation6], 4
          %s379 = int_to_ptr.vmem [resolvable:$true] %s378
          %381 = dma.hbm_to_vmem [thread:$0]  %s2, 16, %s379, [#allocation7]
        $region20: #{tpu_custom_call.1} parent=11 // pred_fallthru
          _
        // Predicated region
        $region21: #{tpu_custom_call.1} parent=11 // pred_check
          %p382 = pneg %p130
        $region22: #{tpu_custom_call.1} parent=11 // pred_check_branch
          %384 = sbr.rel (%p382) target = $region24
        $region23: #{tpu_custom_call.1} parent=11 // pred_region
          %s386 = ssub.s32 512, 512
          %387 = vsyncadd [#allocation7], %s386
          %s388 = sshll.u32 [#allocation8], 4
          %s389 = int_to_ptr.vmem [resolvable:$true] %s388
          %394 = dma.hbm_to_vmem [thread:$0]  %s3, 512, %s389, [#allocation7], 64, 64, 4
        $region24: #{tpu_custom_call.1} parent=11 // pred_fallthru
          _
        // Predicated region
        $region25: #{tpu_custom_call.1} parent=11 // pred_check
          %p395 = pneg %p151
        $region26: #{tpu_custom_call.1} parent=11 // pred_check_branch
          %397 = sbr.rel (%p395) target = $region28
        $region27: #{tpu_custom_call.1} parent=11 // pred_region
          %s399 = ssub.s32 16, 16
          %400 = vsyncadd [#allocation10], %s399
          %s402 = sshll.u32 [#allocation9], 4
          %s403 = int_to_ptr.vmem [resolvable:$true] %s402
          %405 = dma.hbm_to_vmem [thread:$0]  %s4, 16, %s403, [#allocation10]
        $region28: #{tpu_custom_call.1} parent=11 // pred_fallthru
          _
        // Predicated region
        $region29: #{tpu_custom_call.1} parent=11 // pred_check
          %p406 = pneg %p172
        $region30: #{tpu_custom_call.1} parent=11 // pred_check_branch
          %408 = sbr.rel (%p406) target = $region32
        $region31: #{tpu_custom_call.1} parent=11 // pred_region
          %s410 = ssub.s32 8192, 8192
          %411 = vsyncadd [#allocation10], %s410
          %s412 = sshll.u32 [#allocation11], 4
          %s413 = int_to_ptr.vmem [resolvable:$true] %s412
          %418 = dma.hbm_to_vmem [thread:$0]  %s5, 8192, %s413, [#allocation10], 512, 512, 32
        $region32: #{tpu_custom_call.1} parent=11 // pred_fallthru
          _
        // Predicated region
        $region33: #{tpu_custom_call.1} parent=11 // pred_check
          %p419 = pneg %p193
        $region34: #{tpu_custom_call.1} parent=11 // pred_check_branch
          %421 = sbr.rel (%p419) target = $region36
        $region35: #{tpu_custom_call.1} parent=11 // pred_region
          %s423 = ssub.s32 128, 128
          %424 = vsyncadd [#allocation13], %s423
          %s426 = sshll.u32 [#allocation12], 4
          %s427 = int_to_ptr.vmem [resolvable:$true] %s426
          %429 = dma.hbm_to_vmem [thread:$0]  %s6, 128, %s427, [#allocation13]
        $region36: #{tpu_custom_call.1} parent=11 // pred_fallthru
          _
        // Predicated region
        $region37: #{tpu_custom_call.1} parent=11 // pred_check
          %p430 = pneg %p214
        $region38: #{tpu_custom_call.1} parent=11 // pred_check_branch
          %432 = sbr.rel (%p430) target = $region40
        $region39: #{tpu_custom_call.1} parent=11 // pred_region
          %s434 = ssub.s32 16384, 16384
          %435 = vsyncadd [#allocation13], %s434
          %s436 = sshll.u32 [#allocation14], 4
          %s437 = int_to_ptr.vmem [resolvable:$true] %s436
          %442 = dma.hbm_to_vmem [thread:$0]  %s7, 16384, %s437, [#allocation13], 128, 128, 8
        $region40: #{tpu_custom_call.1} parent=11 // pred_fallthru
          _
        // Predicated region
        $region41: #{tpu_custom_call.1} parent=11 // pred_check
          %p443 = pneg %p235
        $region42: #{tpu_custom_call.1} parent=11 // pred_check_branch
          %445 = sbr.rel (%p443) target = $region44
        $region43: #{tpu_custom_call.1} parent=11 // pred_region
          %s447 = ssub.s32 32, 32
          %448 = vsyncadd [#allocation16], %s447
          %s450 = sshll.u32 [#allocation15], 4
          %s451 = int_to_ptr.vmem [resolvable:$true] %s450
          %453 = dma.hbm_to_vmem [thread:$0]  %s8, 32, %s451, [#allocation16]
        $region44: #{tpu_custom_call.1} parent=11 // pred_fallthru
          _
        // Predicated region
        $region45: #{tpu_custom_call.1} parent=11 // pred_check
          %p454 = pneg %p256
        $region46: #{tpu_custom_call.1} parent=11 // pred_check_branch
          %456 = sbr.rel (%p454) target = $region48
        $region47: #{tpu_custom_call.1} parent=11 // pred_region
          _
        $region48: #{tpu_custom_call.1} parent=11 // pred_fallthru
          _
        // Predicated region
        $region49: #{tpu_custom_call.1} parent=11 // pred_check
          %p457 = pneg %p277
        $region50: #{tpu_custom_call.1} parent=11 // pred_check_branch
          %459 = sbr.rel (%p457) target = $region52
        $region51: #{tpu_custom_call.1} parent=11 // pred_region
          %s461 = ssub.s32 16, 16
          %462 = vsyncadd [#allocation16], %s461
          %s464 = sshll.u32 [#allocation17], 4
          %s465 = int_to_ptr.vmem [resolvable:$true] %s464
          %467 = dma.hbm_to_vmem [thread:$0]  %s10, 16, %s465, [#allocation16]
        $region52: #{tpu_custom_call.1} parent=11 // pred_fallthru
          _
        // Predicated region
        $region53: #{tpu_custom_call.1} parent=11 // pred_check
          %p468 = pneg %p298
        $region54: #{tpu_custom_call.1} parent=11 // pred_check_branch
          %470 = sbr.rel (%p468) target = $region56
        $region55: #{tpu_custom_call.1} parent=11 // pred_region
          _
        $region56: #{tpu_custom_call.1} parent=11 // pred_fallthru
          _
        // Predicated region
        $region57: #{tpu_custom_call.1} parent=11 // pred_check
          %p471 = pneg %p319
        $region58: #{tpu_custom_call.1} parent=11 // pred_check_branch
          %473 = sbr.rel (%p471) target = $region60
        $region59: #{tpu_custom_call.1} parent=11 // pred_region
          _
        $region60: #{tpu_custom_call.1} parent=11 // pred_fallthru
          _
      $region12: #{tpu_custom_call.1} parent=5 // pred_fallthru
        _
      %p474 = scmp.lt.s32.totalorder %s27, 2
      // Predicated region
      $region61: #{tpu_custom_call.1} parent=5 // pred_check
        %p475 = pneg %p474
      $region62: #{tpu_custom_call.1} parent=5 // pred_check_branch
        %477 = sbr.rel (%p475) target = $region64
      $region63: #{tpu_custom_call.1} parent=5 // pred_region
        // Predicated region
        $region65: #{tpu_custom_call.1} parent=63 // pred_check
          %p478 = pneg %p61
        $region66: #{tpu_custom_call.1} parent=63 // pred_check_branch
          %480 = sbr.rel (%p478) target = $region68
        $region67: #{tpu_custom_call.1} parent=63 // pred_region
          %s481 = smul.u32 2, %s35
          %p482 = scmp.lt.s32.totalorder %s34, 1
          %s483 = scalar_select %p482, %s34, 1
          %p484 = scmp.lt.s32.totalorder %s481, 1
          %s485 = scalar_select %p484, %s481, 1
          %s486 = smul.addr %s483, 2
          %s487 = sadd.s32 %s485, %s486
          %s488 = smul.addr %s487, 8
          %s489 = scalar_lea.vmem %s0, %s488
          %s490 = smul.u32 2, %s35
        $region68: #{tpu_custom_call.1} parent=63 // pred_fallthru
          _
      $region64: #{tpu_custom_call.1} parent=5 // pred_fallthru
        _
      %p491 = scmp.le.s32.totalorder 1, %s27
      %p492 = scmp.lt.s32.totalorder %s27, 3
      %p493 = pnand %p491, %p492
      %p494 = pneg %p493
      // Predicated region
      $region69: #{tpu_custom_call.1} parent=5 // pred_check
        _
      $region70: #{tpu_custom_call.1} parent=5 // pred_check_branch
        %496 = sbr.rel (%p493) target = $region72
      $region71: #{tpu_custom_call.1} parent=5 // pred_region
        %s497 = ssub.s32 %s27, 1
        // Predicated region
        $region73: #{tpu_custom_call.1} parent=71 // pred_check
          %p498 = pneg %p88
        $region74: #{tpu_custom_call.1} parent=71 // pred_check_branch
          %500 = sbr.rel (%p498) target = $region76
        $region75: #{tpu_custom_call.1} parent=71 // pred_region
          %501 = dma.done [#allocation4], 128
        $region76: #{tpu_custom_call.1} parent=71 // pred_fallthru
          _
        // Predicated region
        $region77: #{tpu_custom_call.1} parent=71 // pred_check
          %p502 = pneg %p109
        $region78: #{tpu_custom_call.1} parent=71 // pred_check_branch
          %504 = sbr.rel (%p502) target = $region80
        $region79: #{tpu_custom_call.1} parent=71 // pred_region
          %505 = dma.done [#allocation7], 16
        $region80: #{tpu_custom_call.1} parent=71 // pred_fallthru
          _
        // Predicated region
        $region81: #{tpu_custom_call.1} parent=71 // pred_check
          %p506 = pneg %p130
        $region82: #{tpu_custom_call.1} parent=71 // pred_check_branch
          %508 = sbr.rel (%p506) target = $region84
        $region83: #{tpu_custom_call.1} parent=71 // pred_region
          %509 = dma.done [#allocation7], 512
        $region84: #{tpu_custom_call.1} parent=71 // pred_fallthru
          _
        // Predicated region
        $region85: #{tpu_custom_call.1} parent=71 // pred_check
          %p510 = pneg %p151
        $region86: #{tpu_custom_call.1} parent=71 // pred_check_branch
          %512 = sbr.rel (%p510) target = $region88
        $region87: #{tpu_custom_call.1} parent=71 // pred_region
          %513 = dma.done [#allocation10], 16
        $region88: #{tpu_custom_call.1} parent=71 // pred_fallthru
          _
        // Predicated region
        $region89: #{tpu_custom_call.1} parent=71 // pred_check
          %p514 = pneg %p172
        $region90: #{tpu_custom_call.1} parent=71 // pred_check_branch
          %516 = sbr.rel (%p514) target = $region92
        $region91: #{tpu_custom_call.1} parent=71 // pred_region
          %517 = dma.done [#allocation10], 8192
        $region92: #{tpu_custom_call.1} parent=71 // pred_fallthru
          _
        // Predicated region
        $region93: #{tpu_custom_call.1} parent=71 // pred_check
          %p518 = pneg %p193
        $region94: #{tpu_custom_call.1} parent=71 // pred_check_branch
          %520 = sbr.rel (%p518) target = $region96
        $region95: #{tpu_custom_call.1} parent=71 // pred_region
          %521 = dma.done [#allocation13], 128
        $region96: #{tpu_custom_call.1} parent=71 // pred_fallthru
          _
        // Predicated region
        $region97: #{tpu_custom_call.1} parent=71 // pred_check
          %p522 = pneg %p214
        $region98: #{tpu_custom_call.1} parent=71 // pred_check_branch
          %524 = sbr.rel (%p522) target = $region100
        $region99: #{tpu_custom_call.1} parent=71 // pred_region
          %525 = dma.done [#allocation13], 16384
        $region100: #{tpu_custom_call.1} parent=71 // pred_fallthru
          _
        // Predicated region
        $region101: #{tpu_custom_call.1} parent=71 // pred_check
          %p526 = pneg %p235
        $region102: #{tpu_custom_call.1} parent=71 // pred_check_branch
          %528 = sbr.rel (%p526) target = $region104
        $region103: #{tpu_custom_call.1} parent=71 // pred_region
          %529 = dma.done [#allocation16], 32
        $region104: #{tpu_custom_call.1} parent=71 // pred_fallthru
          _
        // Predicated region
        $region105: #{tpu_custom_call.1} parent=71 // pred_check
          %p530 = pneg %p277
        $region106: #{tpu_custom_call.1} parent=71 // pred_check_branch
          %532 = sbr.rel (%p530) target = $region108
        $region107: #{tpu_custom_call.1} parent=71 // pred_region
          %533 = dma.done [#allocation16], 16
        $region108: #{tpu_custom_call.1} parent=71 // pred_fallthru
          _
        %s534 = smul.u32 2, %s37
        %p535 = scmp.lt.s32.totalorder %s36, 1
        %s536 = scalar_select %p535, %s36, 1
        %p537 = scmp.lt.s32.totalorder %s534, 1
        %s538 = scalar_select %p537, %s534, 1
        %s539 = smul.addr %s536, 2
        %s540 = sadd.s32 %s538, %s539
        %s541 = smul.addr %s540, 8
        %s542 = scalar_lea.vmem %s0, %s541
        %p543 = pneg %p67
        %p544 = pneg %p64
        %p545 = pneg %p88
        %p546 = pneg %p85
        %p547 = pneg %p109
        %p548 = pneg %p106
        %p549 = pneg %p130
        %p550 = pneg %p127
        %p551 = pneg %p151
        %p552 = pneg %p148
        %p553 = pneg %p172
        %p554 = pneg %p169
        %p555 = pneg %p193
        %p556 = pneg %p190
        %p557 = pneg %p214
        %p558 = pneg %p211
        %p559 = pneg %p235
        %p560 = pneg %p232
        %p561 = pneg %p256
        %p562 = pneg %p253
        %p563 = pneg %p277
        %p564 = pneg %p274
        %p565 = pneg %p298
        %p566 = pneg %p295
        %p567 = pneg %p319
        %p568 = pneg %p316
        %p569 = pneg %p345
        %p570 = pneg %p342
        %s571 = sand.u32 %s332, 1
        %s572 = scalar_lea.sflag [#allocation5], %s571
        %s573 = sand.u32 %s332, 1
        %s574 = scalar_lea.vmem [#allocation18], %s573
        %s575 = smul.u32 2, %s37
        %p576 = scmp.lt.s32.totalorder %s36, 1
        %s577 = scalar_select %p576, %s36, 1
        %p578 = scmp.lt.s32.totalorder %s575, 1
        %s579 = scalar_select %p578, %s575, 1
        %s580 = smul.addr %s577, 2
        %s581 = sadd.s32 %s579, %s580
        %s582 = smul.addr %s581, 8
        %s583 = scalar_lea.vmem %s0, %s582
        %s584 = smul.u32 2, %s37
        %p586 = scmp.eq.s32.totalorder %s37, 0
        // Predicated region
        $region109: #{tpu_custom_call.1} parent=71 // pred_check
          %p587 = pneg %p586
        $region110: #{tpu_custom_call.1} parent=71 // pred_check_branch
          %589 = sbr.rel (%p587) target = $region112
        $region111: #{tpu_custom_call.1} parent=71 // pred_region
          %590 = vst [vmem:[#allocation2] sm:$0xff] -inf
        $region112: #{tpu_custom_call.1} parent=71 // pred_fallthru
          _
        %v591 = vld [vmem:[%s583] sm:$0xff]
        %v592 = vld [vmem:[%s583 + $0x8] sm:$0xff]
        %v593 = vld [vmem:[#allocation3] sm:$0x3f]
        %v594 = vld [vmem:[#allocation6] sm:$0x1]
        %v596 = vlaneseq
        %v597 = vshrl.u32 %v596, 7
        %v598 = vsub.s32 0, %v597
        %v599 = vrot.slane %v594, %v598
        %vm601 = vcmask 48128
        %v603 = vsel %vm601, %v591, 0
        %v606 = vsel %vm601, %v592, 0
        %vm608 = vcmask 1045504
        %v610 = vsel %vm608, %v593, 0
        %612 = vmatprep.subr.mxu0 0.0
        %613 = vmatpush1.msra.mxu0 0.0
        %614 = vmatprep.subr.mxu0 0.0
        %615 = vmatpush1.msra.mxu0 0.0
        %616 = vmatprep.subr.mxu0 0.0
        %617 = vmatpush1.msra.mxu0 0.0
        %618 = vmatprep.subr.mxu0 0.0
        %619 = vmatpush1.msra.mxu0 0.0
        %620 = vmatprep.subr.mxu0 0.0
        %621 = vmatpush1.msra.mxu0 0.0
        %622 = vmatprep.subr.mxu0 0.0
        %623 = vmatpush1.msra.mxu0 0.0
        %624 = vmatprep.subr.mxu0 0.0
        %625 = vmatpush1.msra.mxu0 0.0
        %626 = vmatprep.subr.mxu0 0.0
        %627 = vmatpush1.msra.mxu0 0.0
        %628 = vmatprep.subr.mxu0 0.0
        %629 = vmatpush1.msra.mxu0 0.0
        %630 = vmatprep.subr.mxu0 0.0
        %631 = vmatpush1.msra.mxu0 0.0
        %632 = vmatprep.subr.mxu0 0.0
        %633 = vmatpush1.msra.mxu0 0.0
        %634 = vmatprep.subr.mxu0 0.0
        %635 = vmatpush1.msra.mxu0 0.0
        %636 = vmatprep.subr.mxu0 0.0
        %637 = vmatpush1.msra.mxu0 0.0
        %638 = vmatprep.subr.mxu0 0.0
        %639 = vmatpush1.msra.mxu0 0.0
        %640 = vmatprep.subr.mxu0 0.0
        %641 = vmatpush1.msra.mxu0 0.0
        %642 = vmatprep.subr.mxu0 0.0
        %643 = vmatpush1.msra.mxu0 %v610
        %644 = vmatprep.subr.mxu0 0.0
        %645 = vmatpush2.msra.mxu0 0.0
        %646 = vmatprep.subr.mxu0 0.0
        %647 = vmatpush2.msra.mxu0 0.0
        %648 = vmatprep.subr.mxu0 0.0
        %649 = vmatpush2.msra.mxu0 0.0
        %650 = vmatprep.subr.mxu0 0.0
        %651 = vmatpush2.msra.mxu0 0.0
        %652 = vmatprep.subr.mxu0 0.0
        %653 = vmatpush2.msra.mxu0 0.0
        %654 = vmatprep.subr.mxu0 0.0
        %655 = vmatpush2.msra.mxu0 0.0
        %656 = vmatprep.subr.mxu0 0.0
        %657 = vmatpush2.msra.mxu0 0.0
        %658 = vmatprep.subr.mxu0 0.0
        %659 = vmatpush2.msra.mxu0 0.0
        %660 = vmatprep.subr.mxu0 0.0
        %661 = vmatpush2.msra.mxu0 0.0
        %662 = vmatprep.subr.mxu0 0.0
        %663 = vmatpush2.msra.mxu0 0.0
        %664 = vmatprep.subr.mxu0 0.0
        %665 = vmatpush2.msra.mxu0 0.0
        %666 = vmatprep.subr.mxu0 0.0
        %667 = vmatpush2.msra.mxu0 0.0
        %668 = vmatprep.subr.mxu0 0.0
        %669 = vmatpush2.msra.mxu0 0.0
        %670 = vmatprep.subr.mxu0 0.0
        %671 = vmatpush2.msra.mxu0 0.0
        %672 = vmatprep.subr.mxu0 0.0
        %673 = vmatpush2.msra.mxu0 0.0
        %674 = vmatprep.subr.mxu0 0.0
        %675 = vmatpush2.msra.mxu0 0.0
        %676 = vmatprep.mubr.f32.mxu0 0.0
        %677 = vmatmul.mubr.f32.gmra.mxu0 %v603
        %v678 = vpop.f32.mrf.mxu0
        %v679 = vadd.f32 %v599, %v678
        %v680 = vpop.f32.mrf.mxu0
        %681 = vmatprep.mubr.f32.mxu0 0.0
        %682 = vmatmul.mubr.f32.gmra.mxu0 %v606
        %v683 = vpop.f32.mrf.mxu0
        %v684 = vadd.f32 %v599, %v683
        %v685 = vpop.f32.mrf.mxu0
        %686 = vdwg.mxu0
        %vm687 = vcmp.ge.f32.partialorder %v679, 0.0
        %vm688 = vcmp.ge.f32.partialorder %v684, 0.0
        %v689 = vmul.f32 %v679, 0.01
        %v690 = vmul.f32 %v684, 0.01
        %v691 = vsel %vm687, %v679, %v689
        %v692 = vsel %vm688, %v684, %v690
        %v693 = vpack.c.bf16 %v692, %v691
        %v694 = vld [vmem:[#allocation8] sm:$0xf]
        %v695 = vld [vmem:[#allocation8 + $0x4] sm:$0xf]
        %v696 = vld [vmem:[#allocation8 + $0x8] sm:$0xf]
        %v697 = vld [vmem:[#allocation8 + $0xc] sm:$0xf]
        %v698 = vld [vmem:[#allocation8 + $0x10] sm:$0xf]
        %v699 = vld [vmem:[#allocation8 + $0x14] sm:$0xf]
        %v700 = vld [vmem:[#allocation8 + $0x18] sm:$0xf]
        %v701 = vld [vmem:[#allocation8 + $0x1c] sm:$0xf]
        %v702 = vld [vmem:[#allocation9] sm:$0x1]
        %v704 = vlaneseq
        %v705 = vshrl.u32 %v704, 7
        %v706 = vsub.s32 0, %v705
        %v707 = vrot.slane %v702, %v706
        %v717 = vunpack.c.l.b16 %v694
        %v718 = vunpack.c.l.b16 %v695
        %v719 = vunpack.c.l.b16 %v696
        %v720 = vunpack.c.l.b16 %v697
        %v721 = vunpack.c.l.b16 %v698
        %v722 = vunpack.c.l.b16 %v699
        %v723 = vunpack.c.l.b16 %v700
        %v724 = vunpack.c.l.b16 %v701
        %v725 = vpack.c.b16 %v718, %v717
        %v726 = vpack.c.b16 %v720, %v719
        %v727 = vpack.c.b16 %v722, %v721
        %v728 = vpack.c.b16 %v724, %v723
        %vm733 = vcmask 523264
        %v735 = vsel %vm733, %v693, 0
        %737 = vmatprep.subr.bf16.mxu0 0
        %738 = vmatpush1.bf16.msra.mxu0 0
        %739 = vmatprep.subr.bf16.mxu0 0
        %740 = vmatpush1.bf16.msra.mxu0 0
        %741 = vmatprep.subr.bf16.mxu0 0
        %742 = vmatpush1.bf16.msra.mxu0 0
        %743 = vmatprep.subr.bf16.mxu0 0
        %744 = vmatpush1.bf16.msra.mxu0 0
        %745 = vmatprep.subr.bf16.mxu0 0
        %746 = vmatpush1.bf16.msra.mxu0 %v728
        %747 = vmatprep.subr.bf16.mxu0 0
        %748 = vmatpush1.bf16.msra.mxu0 %v727
        %749 = vmatprep.subr.bf16.mxu0 0
        %750 = vmatpush1.bf16.msra.mxu0 %v726
        %751 = vmatprep.subr.bf16.mxu0 0
        %752 = vmatpush1.bf16.msra.mxu0 %v725
        %753 = vmatprep.subr.bf16.mxu0 0
        %754 = vmatpush2.bf16.msra.mxu0 0
        %755 = vmatprep.subr.bf16.mxu0 0
        %756 = vmatpush2.bf16.msra.mxu0 0
        %757 = vmatprep.subr.bf16.mxu0 0
        %758 = vmatpush2.bf16.msra.mxu0 0
        %759 = vmatprep.subr.bf16.mxu0 0
        %760 = vmatpush2.bf16.msra.mxu0 0
        %761 = vmatprep.subr.bf16.mxu0 0
        %762 = vmatpush2.bf16.msra.mxu0 0
        %763 = vmatprep.subr.bf16.mxu0 0
        %764 = vmatpush2.bf16.msra.mxu0 0
        %765 = vmatprep.subr.bf16.mxu0 0
        %766 = vmatpush2.bf16.msra.mxu0 0
        %767 = vmatprep.subr.bf16.mxu0 0
        %768 = vmatpush2.bf16.msra.mxu0 0
        %769 = vmatprep.mubr.bf16.mxu0 0
        %770 = vmatmul.mubr.bf16.gmra.mxu0 %v735
        %v771 = vpop.f32.mrf.mxu0
        %v772 = vadd.f32 %v707, %v771
        %v773 = vpop.f32.mrf.mxu0
        %v774 = vpop.f32.mrf.mxu0
        %v775 = vadd.f32 %v707, %v774
        %v776 = vpop.f32.mrf.mxu0
        %777 = vdwg.mxu0
        %vm778 = vcmp.ge.f32.partialorder %v772, 0.0
        %vm779 = vcmp.ge.f32.partialorder %v775, 0.0
        %v780 = vmul.f32 %v772, 0.01
        %v781 = vmul.f32 %v775, 0.01
        %v782 = vsel %vm778, %v772, %v780
        %v783 = vsel %vm779, %v775, %v781
        %v784 = vpack.c.bf16 %v783, %v782
        %v785 = vld [vmem:[#allocation11] sm:$0xff]
        %v786 = vld [vmem:[#allocation11 + $0x20] sm:$0xff]
        %v787 = vld [vmem:[#allocation11 + $0x40] sm:$0xff]
        %v788 = vld [vmem:[#allocation11 + $0x60] sm:$0xff]
        %v789 = vld [vmem:[#allocation11 + $0x80] sm:$0xff]
        %v790 = vld [vmem:[#allocation11 + $0xa0] sm:$0xff]
        %v791 = vld [vmem:[#allocation11 + $0xc0] sm:$0xff]
        %v792 = vld [vmem:[#allocation11 + $0xe0] sm:$0xff]
        %v793 = vld [vmem:[#allocation11 + $0x100] sm:$0xff]
        %v794 = vld [vmem:[#allocation11 + $0x120] sm:$0xff]
        %v795 = vld [vmem:[#allocation11 + $0x140] sm:$0xff]
        %v796 = vld [vmem:[#allocation11 + $0x160] sm:$0xff]
        %v797 = vld [vmem:[#allocation11 + $0x180] sm:$0xff]
        %v798 = vld [vmem:[#allocation11 + $0x1a0] sm:$0xff]
        %v799 = vld [vmem:[#allocation11 + $0x1c0] sm:$0xff]
        %v800 = vld [vmem:[#allocation11 + $0x1e0] sm:$0xff]
        %v817 = vunpack.c.l.b16 %v785
        %v818 = vunpack.c.h.b16 %v785
        %v819 = vunpack.c.l.b16 %v786
        %v820 = vunpack.c.h.b16 %v786
        %v821 = vunpack.c.l.b16 %v787
        %v822 = vunpack.c.h.b16 %v787
        %v823 = vunpack.c.l.b16 %v788
        %v824 = vunpack.c.h.b16 %v788
        %v825 = vunpack.c.l.b16 %v789
        %v826 = vunpack.c.h.b16 %v789
        %v827 = vunpack.c.l.b16 %v790
        %v828 = vunpack.c.h.b16 %v790
        %v829 = vunpack.c.l.b16 %v791
        %v830 = vunpack.c.h.b16 %v791
        %v831 = vunpack.c.l.b16 %v792
        %v832 = vunpack.c.h.b16 %v792
        %v833 = vunpack.c.l.b16 %v793
        %v834 = vunpack.c.h.b16 %v793
        %v835 = vunpack.c.l.b16 %v794
        %v836 = vunpack.c.h.b16 %v794
        %v837 = vunpack.c.l.b16 %v795
        %v838 = vunpack.c.h.b16 %v795
        %v839 = vunpack.c.l.b16 %v796
        %v840 = vunpack.c.h.b16 %v796
        %v841 = vunpack.c.l.b16 %v797
        %v842 = vunpack.c.h.b16 %v797
        %v843 = vunpack.c.l.b16 %v798
        %v844 = vunpack.c.h.b16 %v798
        %v845 = vunpack.c.l.b16 %v799
        %v846 = vunpack.c.h.b16 %v799
        %v847 = vunpack.c.l.b16 %v800
        %v848 = vunpack.c.h.b16 %v800
        %v849 = vpack.c.b16 %v819, %v817
        %v850 = vpack.c.b16 %v820, %v818
        %v851 = vpack.c.b16 %v823, %v821
        %v852 = vpack.c.b16 %v824, %v822
        %v853 = vpack.c.b16 %v827, %v825
        %v854 = vpack.c.b16 %v828, %v826
        %v855 = vpack.c.b16 %v831, %v829
        %v856 = vpack.c.b16 %v832, %v830
        %v857 = vpack.c.b16 %v835, %v833
        %v858 = vpack.c.b16 %v836, %v834
        %v859 = vpack.c.b16 %v839, %v837
        %v860 = vpack.c.b16 %v840, %v838
        %v861 = vpack.c.b16 %v843, %v841
        %v862 = vpack.c.b16 %v844, %v842
        %v863 = vpack.c.b16 %v847, %v845
        %v864 = vpack.c.b16 %v848, %v846
        %881 = vmatprep.subr.bf16.mxu0 %v864
        %882 = vmatpush1.bf16.msra.mxu0 %v863
        %883 = vmatprep.subr.bf16.mxu0 %v862
        %884 = vmatpush1.bf16.msra.mxu0 %v861
        %885 = vmatprep.subr.bf16.mxu0 %v860
        %886 = vmatpush1.bf16.msra.mxu0 %v859
        %887 = vmatprep.subr.bf16.mxu0 %v858
        %888 = vmatpush1.bf16.msra.mxu0 %v857
        %889 = vmatprep.subr.bf16.mxu0 %v856
        %890 = vmatpush1.bf16.msra.mxu0 %v855
        %891 = vmatprep.subr.bf16.mxu0 %v854
        %892 = vmatpush1.bf16.msra.mxu0 %v853
        %893 = vmatprep.subr.bf16.mxu0 %v852
        %894 = vmatpush1.bf16.msra.mxu0 %v851
        %895 = vmatprep.subr.bf16.mxu0 %v850
        %896 = vmatpush1.bf16.msra.mxu0 %v849
        %897 = vmatprep.subr.bf16.mxu0 0
        %898 = vmatpush2.bf16.msra.mxu0 0
        %899 = vmatprep.subr.bf16.mxu0 0
        %900 = vmatpush2.bf16.msra.mxu0 0
        %901 = vmatprep.subr.bf16.mxu0 0
        %902 = vmatpush2.bf16.msra.mxu0 0
        %903 = vmatprep.subr.bf16.mxu0 0
        %904 = vmatpush2.bf16.msra.mxu0 0
        %905 = vmatprep.subr.bf16.mxu0 0
        %906 = vmatpush2.bf16.msra.mxu0 0
        %907 = vmatprep.subr.bf16.mxu0 0
        %908 = vmatpush2.bf16.msra.mxu0 0
        %909 = vmatprep.subr.bf16.mxu0 0
        %910 = vmatpush2.bf16.msra.mxu0 0
        %911 = vmatprep.subr.bf16.mxu0 0
        %912 = vmatpush2.bf16.msra.mxu0 0
        %913 = vmatprep.mubr.bf16.mxu0 0
        %914 = vmatmul.mubr.bf16.gmra.mxu0 %v784
        %v915 = vpop.f32.mrf.mxu0
        %v916 = vadd.f32 0.0, %v915
        %v917 = vpop.f32.mrf.mxu0
        %v918 = vadd.f32 0.0, %v917
        %v919 = vpop.f32.mrf.mxu0
        %v920 = vadd.f32 0.0, %v919
        %v921 = vpop.f32.mrf.mxu0
        %v922 = vadd.f32 0.0, %v921
        %923 = vdwg.mxu0
        %v924 = vmax.f32 %v916, %v920
        %v925 = vmax.f32 %v918, %v922
        %v926 = vrot.slane %v924, 4
        %v927 = vmax.f32 %v924, %v926
        %v928 = vrot.slane %v927, 2
        %v929 = vmax.f32 %v927, %v928
        %v930 = vrot.slane %v929, 1
        %v931 = vmax.f32 %v929, %v930
        %v932 = vrot.slane %v925, 4
        %v933 = vmax.f32 %v925, %v932
        %v934 = vrot.slane %v933, 2
        %v935 = vmax.f32 %v933, %v934
        %v936 = vrot.slane %v935, 1
        %v937 = vmax.f32 %v935, %v936
        %v938 = vld [vmem:[#allocation2] sm:$0x3]
        %v941 = vcombine.low %v931, %v937
        %v943 = vunpack.c.l.s4 1966171168
        %v944 = vunpack.c.0.s8 %v943
        %v945 = vlaneseq
        %v946 = vshrl.u32 %v945, 7
        %v947 = vsub.s32 %v944, %v946
        %v948 = vrot.slane %v941, %v947
        %v950 = vunpack.c.l.s4 1966171168
        %v951 = vunpack.c.0.s8 %v950
        %v952 = vlaneseq
        %v953 = vshrl.u32 %v952, 7
        %v954 = vsub.s32 %v951, %v953
        %v955 = vrot.slane %v948, %v954
        %v957 = vmax.f32 %v938, %v955
        %v958 = vlaneseq
        %vm959 = vcmp.ge.s32.totalorder %v958, 0
        %vm960 = vcmp.lt.s32.totalorder %v958, 256
        %vm961 = vmand %vm959, %vm960
        %962 = vst.msk [vmem:[#allocation2] sm:$0x3] %vm961, %v957
        %v963 = vld [vmem:[#allocation11 + $0x8] sm:$0xff]
        %v964 = vld [vmem:[#allocation11 + $0x28] sm:$0xff]
        %v965 = vld [vmem:[#allocation11 + $0x48] sm:$0xff]
        %v966 = vld [vmem:[#allocation11 + $0x68] sm:$0xff]
        %v967 = vld [vmem:[#allocation11 + $0x88] sm:$0xff]
        %v968 = vld [vmem:[#allocation11 + $0xa8] sm:$0xff]
        %v969 = vld [vmem:[#allocation11 + $0xc8] sm:$0xff]
        %v970 = vld [vmem:[#allocation11 + $0xe8] sm:$0xff]
        %v971 = vld [vmem:[#allocation11 + $0x108] sm:$0xff]
        %v972 = vld [vmem:[#allocation11 + $0x128] sm:$0xff]
        %v973 = vld [vmem:[#allocation11 + $0x148] sm:$0xff]
        %v974 = vld [vmem:[#allocation11 + $0x168] sm:$0xff]
        %v975 = vld [vmem:[#allocation11 + $0x188] sm:$0xff]
        %v976 = vld [vmem:[#allocation11 + $0x1a8] sm:$0xff]
        %v977 = vld [vmem:[#allocation11 + $0x1c8] sm:$0xff]
        %v978 = vld [vmem:[#allocation11 + $0x1e8] sm:$0xff]
        %v995 = vunpack.c.l.b16 %v963
        %v996 = vunpack.c.h.b16 %v963
        %v997 = vunpack.c.l.b16 %v964
        %v998 = vunpack.c.h.b16 %v964
        %v999 = vunpack.c.l.b16 %v965
        %v1000 = vunpack.c.h.b16 %v965
        %v1001 = vunpack.c.l.b16 %v966
        %v1002 = vunpack.c.h.b16 %v966
        %v1003 = vunpack.c.l.b16 %v967
        %v1004 = vunpack.c.h.b16 %v967
        %v1005 = vunpack.c.l.b16 %v968
        %v1006 = vunpack.c.h.b16 %v968
        %v1007 = vunpack.c.l.b16 %v969
        %v1008 = vunpack.c.h.b16 %v969
        %v1009 = vunpack.c.l.b16 %v970
        %v1010 = vunpack.c.h.b16 %v970
        %v1011 = vunpack.c.l.b16 %v971
        %v1012 = vunpack.c.h.b16 %v971
        %v1013 = vunpack.c.l.b16 %v972
        %v1014 = vunpack.c.h.b16 %v972
        %v1015 = vunpack.c.l.b16 %v973
        %v1016 = vunpack.c.h.b16 %v973
        %v1017 = vunpack.c.l.b16 %v974
        %v1018 = vunpack.c.h.b16 %v974
        %v1019 = vunpack.c.l.b16 %v975
        %v1020 = vunpack.c.h.b16 %v975
        %v1021 = vunpack.c.l.b16 %v976
        %v1022 = vunpack.c.h.b16 %v976
        %v1023 = vunpack.c.l.b16 %v977
        %v1024 = vunpack.c.h.b16 %v977
        %v1025 = vunpack.c.l.b16 %v978
        %v1026 = vunpack.c.h.b16 %v978
        %v1027 = vpack.c.b16 %v997, %v995
        %v1028 = vpack.c.b16 %v998, %v996
        %v1029 = vpack.c.b16 %v1001, %v999
        %v1030 = vpack.c.b16 %v1002, %v1000
        %v1031 = vpack.c.b16 %v1005, %v1003
        %v1032 = vpack.c.b16 %v1006, %v1004
        %v1033 = vpack.c.b16 %v1009, %v1007
        %v1034 = vpack.c.b16 %v1010, %v1008
        %v1035 = vpack.c.b16 %v1013, %v1011
        %v1036 = vpack.c.b16 %v1014, %v1012
        %v1037 = vpack.c.b16 %v1017, %v1015
        %v1038 = vpack.c.b16 %v1018, %v1016
        %v1039 = vpack.c.b16 %v1021, %v1019
        %v1040 = vpack.c.b16 %v1022, %v1020
        %v1041 = vpack.c.b16 %v1025, %v1023
        %v1042 = vpack.c.b16 %v1026, %v1024
        %1059 = vmatprep.subr.bf16.mxu0 %v1042
        %1060 = vmatpush1.bf16.msra.mxu0 %v1041
        %1061 = vmatprep.subr.bf16.mxu0 %v1040
        %1062 = vmatpush1.bf16.msra.mxu0 %v1039
        %1063 = vmatprep.subr.bf16.mxu0 %v1038
        %1064 = vmatpush1.bf16.msra.mxu0 %v1037
        %1065 = vmatprep.subr.bf16.mxu0 %v1036
        %1066 = vmatpush1.bf16.msra.mxu0 %v1035
        %1067 = vmatprep.subr.bf16.mxu0 %v1034
        %1068 = vmatpush1.bf16.msra.mxu0 %v1033
        %1069 = vmatprep.subr.bf16.mxu0 %v1032
        %1070 = vmatpush1.bf16.msra.mxu0 %v1031
        %1071 = vmatprep.subr.bf16.mxu0 %v1030
        %1072 = vmatpush1.bf16.msra.mxu0 %v1029
        %1073 = vmatprep.subr.bf16.mxu0 %v1028
        %1074 = vmatpush1.bf16.msra.mxu0 %v1027
        %1075 = vmatprep.subr.bf16.mxu0 0
        %1076 = vmatpush2.bf16.msra.mxu0 0
        %1077 = vmatprep.subr.bf16.mxu0 0
        %1078 = vmatpush2.bf16.msra.mxu0 0
        %1079 = vmatprep.subr.bf16.mxu0 0
        %1080 = vmatpush2.bf16.msra.mxu0 0
        %1081 = vmatprep.subr.bf16.mxu0 0
        %1082 = vmatpush2.bf16.msra.mxu0 0
        %1083 = vmatprep.subr.bf16.mxu0 0
        %1084 = vmatpush2.bf16.msra.mxu0 0
        %1085 = vmatprep.subr.bf16.mxu0 0
        %1086 = vmatpush2.bf16.msra.mxu0 0
        %1087 = vmatprep.subr.bf16.mxu0 0
        %1088 = vmatpush2.bf16.msra.mxu0 0
        %1089 = vmatprep.subr.bf16.mxu0 0
        %1090 = vmatpush2.bf16.msra.mxu0 0
        %1091 = vmatprep.mubr.bf16.mxu0 0
        %1092 = vmatmul.mubr.bf16.gmra.mxu0 %v784
        %v1093 = vpop.f32.mrf.mxu0
        %v1094 = vadd.f32 0.0, %v1093
        %v1095 = vpop.f32.mrf.mxu0
        %v1096 = vadd.f32 0.0, %v1095
        %v1097 = vpop.f32.mrf.mxu0
        %v1098 = vadd.f32 0.0, %v1097
        %v1099 = vpop.f32.mrf.mxu0
        %v1100 = vadd.f32 0.0, %v1099
        %1101 = vdwg.mxu0
        %v1102 = vmax.f32 %v1094, %v1098
        %v1103 = vmax.f32 %v1096, %v1100
        %v1104 = vrot.slane %v1102, 4
        %v1105 = vmax.f32 %v1102, %v1104
        %v1106 = vrot.slane %v1105, 2
        %v1107 = vmax.f32 %v1105, %v1106
        %v1108 = vrot.slane %v1107, 1
        %v1109 = vmax.f32 %v1107, %v1108
        %v1110 = vrot.slane %v1103, 4
        %v1111 = vmax.f32 %v1103, %v1110
        %v1112 = vrot.slane %v1111, 2
        %v1113 = vmax.f32 %v1111, %v1112
        %v1114 = vrot.slane %v1113, 1
        %v1115 = vmax.f32 %v1113, %v1114
        %v1116 = vld [vmem:[#allocation2 + $0x2] sm:$0x3]
        %v1119 = vcombine.low %v1109, %v1115
        %v1121 = vunpack.c.l.s4 1966171168
        %v1122 = vunpack.c.0.s8 %v1121
        %v1123 = vlaneseq
        %v1124 = vshrl.u32 %v1123, 7
        %v1125 = vsub.s32 %v1122, %v1124
        %v1126 = vrot.slane %v1119, %v1125
        %v1128 = vunpack.c.l.s4 1966171168
        %v1129 = vunpack.c.0.s8 %v1128
        %v1130 = vlaneseq
        %v1131 = vshrl.u32 %v1130, 7
        %v1132 = vsub.s32 %v1129, %v1131
        %v1133 = vrot.slane %v1126, %v1132
        %v1135 = vmax.f32 %v1116, %v1133
        %1136 = vst.msk [vmem:[#allocation2 + $0x2] sm:$0x3] %vm961, %v1135
        %v1137 = vld [vmem:[#allocation11 + $0x10] sm:$0xff]
        %v1138 = vld [vmem:[#allocation11 + $0x30] sm:$0xff]
        %v1139 = vld [vmem:[#allocation11 + $0x50] sm:$0xff]
        %v1140 = vld [vmem:[#allocation11 + $0x70] sm:$0xff]
        %v1141 = vld [vmem:[#allocation11 + $0x90] sm:$0xff]
        %v1142 = vld [vmem:[#allocation11 + $0xb0] sm:$0xff]
        %v1143 = vld [vmem:[#allocation11 + $0xd0] sm:$0xff]
        %v1144 = vld [vmem:[#allocation11 + $0xf0] sm:$0xff]
        %v1145 = vld [vmem:[#allocation11 + $0x110] sm:$0xff]
        %v1146 = vld [vmem:[#allocation11 + $0x130] sm:$0xff]
        %v1147 = vld [vmem:[#allocation11 + $0x150] sm:$0xff]
        %v1148 = vld [vmem:[#allocation11 + $0x170] sm:$0xff]
        %v1149 = vld [vmem:[#allocation11 + $0x190] sm:$0xff]
        %v1150 = vld [vmem:[#allocation11 + $0x1b0] sm:$0xff]
        %v1151 = vld [vmem:[#allocation11 + $0x1d0] sm:$0xff]
        %v1152 = vld [vmem:[#allocation11 + $0x1f0] sm:$0xff]
        %v1169 = vunpack.c.l.b16 %v1137
        %v1170 = vunpack.c.h.b16 %v1137
        %v1171 = vunpack.c.l.b16 %v1138
        %v1172 = vunpack.c.h.b16 %v1138
        %v1173 = vunpack.c.l.b16 %v1139
        %v1174 = vunpack.c.h.b16 %v1139
        %v1175 = vunpack.c.l.b16 %v1140
        %v1176 = vunpack.c.h.b16 %v1140
        %v1177 = vunpack.c.l.b16 %v1141
        %v1178 = vunpack.c.h.b16 %v1141
        %v1179 = vunpack.c.l.b16 %v1142
        %v1180 = vunpack.c.h.b16 %v1142
        %v1181 = vunpack.c.l.b16 %v1143
        %v1182 = vunpack.c.h.b16 %v1143
        %v1183 = vunpack.c.l.b16 %v1144
        %v1184 = vunpack.c.h.b16 %v1144
        %v1185 = vunpack.c.l.b16 %v1145
        %v1186 = vunpack.c.h.b16 %v1145
        %v1187 = vunpack.c.l.b16 %v1146
        %v1188 = vunpack.c.h.b16 %v1146
        %v1189 = vunpack.c.l.b16 %v1147
        %v1190 = vunpack.c.h.b16 %v1147
        %v1191 = vunpack.c.l.b16 %v1148
        %v1192 = vunpack.c.h.b16 %v1148
        %v1193 = vunpack.c.l.b16 %v1149
        %v1194 = vunpack.c.h.b16 %v1149
        %v1195 = vunpack.c.l.b16 %v1150
        %v1196 = vunpack.c.h.b16 %v1150
        %v1197 = vunpack.c.l.b16 %v1151
        %v1198 = vunpack.c.h.b16 %v1151
        %v1199 = vunpack.c.l.b16 %v1152
        %v1200 = vunpack.c.h.b16 %v1152
        %v1201 = vpack.c.b16 %v1171, %v1169
        %v1202 = vpack.c.b16 %v1172, %v1170
        %v1203 = vpack.c.b16 %v1175, %v1173
        %v1204 = vpack.c.b16 %v1176, %v1174
        %v1205 = vpack.c.b16 %v1179, %v1177
        %v1206 = vpack.c.b16 %v1180, %v1178
        %v1207 = vpack.c.b16 %v1183, %v1181
        %v1208 = vpack.c.b16 %v1184, %v1182
        %v1209 = vpack.c.b16 %v1187, %v1185
        %v1210 = vpack.c.b16 %v1188, %v1186
        %v1211 = vpack.c.b16 %v1191, %v1189
        %v1212 = vpack.c.b16 %v1192, %v1190
        %v1213 = vpack.c.b16 %v1195, %v1193
        %v1214 = vpack.c.b16 %v1196, %v1194
        %v1215 = vpack.c.b16 %v1199, %v1197
        %v1216 = vpack.c.b16 %v1200, %v1198
        %1233 = vmatprep.subr.bf16.mxu0 %v1216
        %1234 = vmatpush1.bf16.msra.mxu0 %v1215
        %1235 = vmatprep.subr.bf16.mxu0 %v1214
        %1236 = vmatpush1.bf16.msra.mxu0 %v1213
        %1237 = vmatprep.subr.bf16.mxu0 %v1212
        %1238 = vmatpush1.bf16.msra.mxu0 %v1211
        %1239 = vmatprep.subr.bf16.mxu0 %v1210
        %1240 = vmatpush1.bf16.msra.mxu0 %v1209
        %1241 = vmatprep.subr.bf16.mxu0 %v1208
        %1242 = vmatpush1.bf16.msra.mxu0 %v1207
        %1243 = vmatprep.subr.bf16.mxu0 %v1206
        %1244 = vmatpush1.bf16.msra.mxu0 %v1205
        %1245 = vmatprep.subr.bf16.mxu0 %v1204
        %1246 = vmatpush1.bf16.msra.mxu0 %v1203
        %1247 = vmatprep.subr.bf16.mxu0 %v1202
        %1248 = vmatpush1.bf16.msra.mxu0 %v1201
        %1249 = vmatprep.subr.bf16.mxu0 0
        %1250 = vmatpush2.bf16.msra.mxu0 0
        %1251 = vmatprep.subr.bf16.mxu0 0
        %1252 = vmatpush2.bf16.msra.mxu0 0
        %1253 = vmatprep.subr.bf16.mxu0 0
        %1254 = vmatpush2.bf16.msra.mxu0 0
        %1255 = vmatprep.subr.bf16.mxu0 0
        %1256 = vmatpush2.bf16.msra.mxu0 0
        %1257 = vmatprep.subr.bf16.mxu0 0
        %1258 = vmatpush2.bf16.msra.mxu0 0
        %1259 = vmatprep.subr.bf16.mxu0 0
        %1260 = vmatpush2.bf16.msra.mxu0 0
        %1261 = vmatprep.subr.bf16.mxu0 0
        %1262 = vmatpush2.bf16.msra.mxu0 0
        %1263 = vmatprep.subr.bf16.mxu0 0
        %1264 = vmatpush2.bf16.msra.mxu0 0
        %1265 = vmatprep.mubr.bf16.mxu0 0
        %1266 = vmatmul.mubr.bf16.gmra.mxu0 %v784
        %v1267 = vpop.f32.mrf.mxu0
        %v1268 = vadd.f32 0.0, %v1267
        %v1269 = vpop.f32.mrf.mxu0
        %v1270 = vadd.f32 0.0, %v1269
        %v1271 = vpop.f32.mrf.mxu0
        %v1272 = vadd.f32 0.0, %v1271
        %v1273 = vpop.f32.mrf.mxu0
        %v1274 = vadd.f32 0.0, %v1273
        %1275 = vdwg.mxu0
        %v1276 = vmax.f32 %v1268, %v1272
        %v1277 = vmax.f32 %v1270, %v1274
        %v1278 = vrot.slane %v1276, 4
        %v1279 = vmax.f32 %v1276, %v1278
        %v1280 = vrot.slane %v1279, 2
        %v1281 = vmax.f32 %v1279, %v1280
        %v1282 = vrot.slane %v1281, 1
        %v1283 = vmax.f32 %v1281, %v1282
        %v1284 = vrot.slane %v1277, 4
        %v1285 = vmax.f32 %v1277, %v1284
        %v1286 = vrot.slane %v1285, 2
        %v1287 = vmax.f32 %v1285, %v1286
        %v1288 = vrot.slane %v1287, 1
        %v1289 = vmax.f32 %v1287, %v1288
        %v1290 = vld [vmem:[#allocation2 + $0x4] sm:$0x3]
        %v1293 = vcombine.low %v1283, %v1289
        %v1295 = vunpack.c.l.s4 1966171168
        %v1296 = vunpack.c.0.s8 %v1295
        %v1297 = vlaneseq
        %v1298 = vshrl.u32 %v1297, 7
        %v1299 = vsub.s32 %v1296, %v1298
        %v1300 = vrot.slane %v1293, %v1299
        %v1302 = vunpack.c.l.s4 1966171168
        %v1303 = vunpack.c.0.s8 %v1302
        %v1304 = vlaneseq
        %v1305 = vshrl.u32 %v1304, 7
        %v1306 = vsub.s32 %v1303, %v1305
        %v1307 = vrot.slane %v1300, %v1306
        %v1309 = vmax.f32 %v1290, %v1307
        %1310 = vst.msk [vmem:[#allocation2 + $0x4] sm:$0x3] %vm961, %v1309
        %v1311 = vld [vmem:[#allocation11 + $0x18] sm:$0xff]
        %v1312 = vld [vmem:[#allocation11 + $0x38] sm:$0xff]
        %v1313 = vld [vmem:[#allocation11 + $0x58] sm:$0xff]
        %v1314 = vld [vmem:[#allocation11 + $0x78] sm:$0xff]
        %v1315 = vld [vmem:[#allocation11 + $0x98] sm:$0xff]
        %v1316 = vld [vmem:[#allocation11 + $0xb8] sm:$0xff]
        %v1317 = vld [vmem:[#allocation11 + $0xd8] sm:$0xff]
        %v1318 = vld [vmem:[#allocation11 + $0xf8] sm:$0xff]
        %v1319 = vld [vmem:[#allocation11 + $0x118] sm:$0xff]
        %v1320 = vld [vmem:[#allocation11 + $0x138] sm:$0xff]
        %v1321 = vld [vmem:[#allocation11 + $0x158] sm:$0xff]
        %v1322 = vld [vmem:[#allocation11 + $0x178] sm:$0xff]
        %v1323 = vld [vmem:[#allocation11 + $0x198] sm:$0xff]
        %v1324 = vld [vmem:[#allocation11 + $0x1b8] sm:$0xff]
        %v1325 = vld [vmem:[#allocation11 + $0x1d8] sm:$0xff]
        %v1326 = vld [vmem:[#allocation11 + $0x1f8] sm:$0xff]
        %v1343 = vunpack.c.l.b16 %v1311
        %v1344 = vunpack.c.h.b16 %v1311
        %v1345 = vunpack.c.l.b16 %v1312
        %v1346 = vunpack.c.h.b16 %v1312
        %v1347 = vunpack.c.l.b16 %v1313
        %v1348 = vunpack.c.h.b16 %v1313
        %v1349 = vunpack.c.l.b16 %v1314
        %v1350 = vunpack.c.h.b16 %v1314
        %v1351 = vunpack.c.l.b16 %v1315
        %v1352 = vunpack.c.h.b16 %v1315
        %v1353 = vunpack.c.l.b16 %v1316
        %v1354 = vunpack.c.h.b16 %v1316
        %v1355 = vunpack.c.l.b16 %v1317
        %v1356 = vunpack.c.h.b16 %v1317
        %v1357 = vunpack.c.l.b16 %v1318
        %v1358 = vunpack.c.h.b16 %v1318
        %v1359 = vunpack.c.l.b16 %v1319
        %v1360 = vunpack.c.h.b16 %v1319
        %v1361 = vunpack.c.l.b16 %v1320
        %v1362 = vunpack.c.h.b16 %v1320
        %v1363 = vunpack.c.l.b16 %v1321
        %v1364 = vunpack.c.h.b16 %v1321
        %v1365 = vunpack.c.l.b16 %v1322
        %v1366 = vunpack.c.h.b16 %v1322
        %v1367 = vunpack.c.l.b16 %v1323
        %v1368 = vunpack.c.h.b16 %v1323
        %v1369 = vunpack.c.l.b16 %v1324
        %v1370 = vunpack.c.h.b16 %v1324
        %v1371 = vunpack.c.l.b16 %v1325
        %v1372 = vunpack.c.h.b16 %v1325
        %v1373 = vunpack.c.l.b16 %v1326
        %v1374 = vunpack.c.h.b16 %v1326
        %v1375 = vpack.c.b16 %v1345, %v1343
        %v1376 = vpack.c.b16 %v1346, %v1344
        %v1377 = vpack.c.b16 %v1349, %v1347
        %v1378 = vpack.c.b16 %v1350, %v1348
        %v1379 = vpack.c.b16 %v1353, %v1351
        %v1380 = vpack.c.b16 %v1354, %v1352
        %v1381 = vpack.c.b16 %v1357, %v1355
        %v1382 = vpack.c.b16 %v1358, %v1356
        %v1383 = vpack.c.b16 %v1361, %v1359
        %v1384 = vpack.c.b16 %v1362, %v1360
        %v1385 = vpack.c.b16 %v1365, %v1363
        %v1386 = vpack.c.b16 %v1366, %v1364
        %v1387 = vpack.c.b16 %v1369, %v1367
        %v1388 = vpack.c.b16 %v1370, %v1368
        %v1389 = vpack.c.b16 %v1373, %v1371
        %v1390 = vpack.c.b16 %v1374, %v1372
        %1407 = vmatprep.subr.bf16.mxu0 %v1390
        %1408 = vmatpush1.bf16.msra.mxu0 %v1389
        %1409 = vmatprep.subr.bf16.mxu0 %v1388
        %1410 = vmatpush1.bf16.msra.mxu0 %v1387
        %1411 = vmatprep.subr.bf16.mxu0 %v1386
        %1412 = vmatpush1.bf16.msra.mxu0 %v1385
        %1413 = vmatprep.subr.bf16.mxu0 %v1384
        %1414 = vmatpush1.bf16.msra.mxu0 %v1383
        %1415 = vmatprep.subr.bf16.mxu0 %v1382
        %1416 = vmatpush1.bf16.msra.mxu0 %v1381
        %1417 = vmatprep.subr.bf16.mxu0 %v1380
        %1418 = vmatpush1.bf16.msra.mxu0 %v1379
        %1419 = vmatprep.subr.bf16.mxu0 %v1378
        %1420 = vmatpush1.bf16.msra.mxu0 %v1377
        %1421 = vmatprep.subr.bf16.mxu0 %v1376
        %1422 = vmatpush1.bf16.msra.mxu0 %v1375
        %1423 = vmatprep.subr.bf16.mxu0 0
        %1424 = vmatpush2.bf16.msra.mxu0 0
        %1425 = vmatprep.subr.bf16.mxu0 0
        %1426 = vmatpush2.bf16.msra.mxu0 0
        %1427 = vmatprep.subr.bf16.mxu0 0
        %1428 = vmatpush2.bf16.msra.mxu0 0
        %1429 = vmatprep.subr.bf16.mxu0 0
        %1430 = vmatpush2.bf16.msra.mxu0 0
        %1431 = vmatprep.subr.bf16.mxu0 0
        %1432 = vmatpush2.bf16.msra.mxu0 0
        %1433 = vmatprep.subr.bf16.mxu0 0
        %1434 = vmatpush2.bf16.msra.mxu0 0
        %1435 = vmatprep.subr.bf16.mxu0 0
        %1436 = vmatpush2.bf16.msra.mxu0 0
        %1437 = vmatprep.subr.bf16.mxu0 0
        %1438 = vmatpush2.bf16.msra.mxu0 0
        %1439 = vmatprep.mubr.bf16.mxu0 0
        %1440 = vmatmul.mubr.bf16.gmra.mxu0 %v784
        %v1441 = vpop.f32.mrf.mxu0
        %v1442 = vadd.f32 0.0, %v1441
        %v1443 = vpop.f32.mrf.mxu0
        %v1444 = vadd.f32 0.0, %v1443
        %v1445 = vpop.f32.mrf.mxu0
        %v1446 = vadd.f32 0.0, %v1445
        %v1447 = vpop.f32.mrf.mxu0
        %v1448 = vadd.f32 0.0, %v1447
        %1449 = vdwg.mxu0
        %v1450 = vmax.f32 %v1442, %v1446
        %v1451 = vmax.f32 %v1444, %v1448
        %v1452 = vrot.slane %v1450, 4
        %v1453 = vmax.f32 %v1450, %v1452
        %v1454 = vrot.slane %v1453, 2
        %v1455 = vmax.f32 %v1453, %v1454
        %v1456 = vrot.slane %v1455, 1
        %v1457 = vmax.f32 %v1455, %v1456
        %v1458 = vrot.slane %v1451, 4
        %v1459 = vmax.f32 %v1451, %v1458
        %v1460 = vrot.slane %v1459, 2
        %v1461 = vmax.f32 %v1459, %v1460
        %v1462 = vrot.slane %v1461, 1
        %v1463 = vmax.f32 %v1461, %v1462
        %v1464 = vld [vmem:[#allocation2 + $0x6] sm:$0x3]
        %v1467 = vcombine.low %v1457, %v1463
        %v1469 = vunpack.c.l.s4 1966171168
        %v1470 = vunpack.c.0.s8 %v1469
        %v1471 = vlaneseq
        %v1472 = vshrl.u32 %v1471, 7
        %v1473 = vsub.s32 %v1470, %v1472
        %v1474 = vrot.slane %v1467, %v1473
        %v1476 = vunpack.c.l.s4 1966171168
        %v1477 = vunpack.c.0.s8 %v1476
        %v1478 = vlaneseq
        %v1479 = vshrl.u32 %v1478, 7
        %v1480 = vsub.s32 %v1477, %v1479
        %v1481 = vrot.slane %v1474, %v1480
        %v1483 = vmax.f32 %v1464, %v1481
        %1484 = vst.msk [vmem:[#allocation2 + $0x6] sm:$0x3] %vm961, %v1483
        // Predicated region
        $region113: #{tpu_custom_call.1} parent=71 // pred_check
          %p1485 = pneg %p586
        $region114: #{tpu_custom_call.1} parent=71 // pred_check_branch
          %1487 = sbr.rel (%p1485) target = $region116
        $region115: #{tpu_custom_call.1} parent=71 // pred_region
          %v1488 = vld [vmem:[#allocation2] sm:$0xff]
          %v1489 = vld [vmem:[#allocation12] sm:$0xff]
          %v1490 = vadd.f32 %v1488, %v1489
          %v1492 = vlaneseq
          %v1493 = vshrl.u32 %v1492, 7
          %v1494 = vsub.s32 0, %v1493
          %v1495 = vrot.slane %v1490, %v1494
          %v1496 = vlaneseq
          %v1497 = vshrl.u32 %v1496, 7
          %v1498 = vsub.s32 1, %v1497
          %v1499 = vrot.slane %v1490, %v1498
          %v1500 = vlaneseq
          %v1501 = vshrl.u32 %v1500, 7
          %v1502 = vsub.s32 2, %v1501
          %v1503 = vrot.slane %v1490, %v1502
          %v1504 = vlaneseq
          %v1505 = vshrl.u32 %v1504, 7
          %v1506 = vsub.s32 3, %v1505
          %v1507 = vrot.slane %v1490, %v1506
          %v1508 = vlaneseq
          %v1509 = vshrl.u32 %v1508, 7
          %v1510 = vsub.s32 4, %v1509
          %v1511 = vrot.slane %v1490, %v1510
          %v1512 = vlaneseq
          %v1513 = vshrl.u32 %v1512, 7
          %v1514 = vsub.s32 5, %v1513
          %v1515 = vrot.slane %v1490, %v1514
          %v1516 = vlaneseq
          %v1517 = vshrl.u32 %v1516, 7
          %v1518 = vsub.s32 6, %v1517
          %v1519 = vrot.slane %v1490, %v1518
          %v1520 = vlaneseq
          %v1521 = vshrl.u32 %v1520, 7
          %v1522 = vsub.s32 7, %v1521
          %v1523 = vrot.slane %v1490, %v1522
          %v1532 = vpack.c.bf16 %v1495, %v1495
          %v1533 = vpack.c.bf16 %v1499, %v1499
          %v1534 = vpack.c.bf16 %v1503, %v1503
          %v1535 = vpack.c.bf16 %v1507, %v1507
          %v1536 = vpack.c.bf16 %v1511, %v1511
          %v1537 = vpack.c.bf16 %v1515, %v1515
          %v1538 = vpack.c.bf16 %v1519, %v1519
          %v1539 = vpack.c.bf16 %v1523, %v1523
          %v1540 = vld [vmem:[#allocation14] sm:$0xff]
          %v1541 = vld [vmem:[#allocation14 + $0x8] sm:$0xff]
          %v1542 = vld [vmem:[#allocation14 + $0x10] sm:$0xff]
          %v1543 = vld [vmem:[#allocation14 + $0x18] sm:$0xff]
          %v1544 = vld [vmem:[#allocation14 + $0x20] sm:$0xff]
          %v1545 = vld [vmem:[#allocation14 + $0x28] sm:$0xff]
          %v1546 = vld [vmem:[#allocation14 + $0x30] sm:$0xff]
          %v1547 = vld [vmem:[#allocation14 + $0x38] sm:$0xff]
          %v1548 = vld [vmem:[#allocation14 + $0x40] sm:$0xff]
          %v1549 = vld [vmem:[#allocation14 + $0x48] sm:$0xff]
          %v1550 = vld [vmem:[#allocation14 + $0x50] sm:$0xff]
          %v1551 = vld [vmem:[#allocation14 + $0x58] sm:$0xff]
          %v1552 = vld [vmem:[#allocation14 + $0x60] sm:$0xff]
          %v1553 = vld [vmem:[#allocation14 + $0x68] sm:$0xff]
          %v1554 = vld [vmem:[#allocation14 + $0x70] sm:$0xff]
          %v1555 = vld [vmem:[#allocation14 + $0x78] sm:$0xff]
          %v1556 = vld [vmem:[#allocation14 + $0x80] sm:$0xff]
          %v1557 = vld [vmem:[#allocation14 + $0x88] sm:$0xff]
          %v1558 = vld [vmem:[#allocation14 + $0x90] sm:$0xff]
          %v1559 = vld [vmem:[#allocation14 + $0x98] sm:$0xff]
          %v1560 = vld [vmem:[#allocation14 + $0xa0] sm:$0xff]
          %v1561 = vld [vmem:[#allocation14 + $0xa8] sm:$0xff]
          %v1562 = vld [vmem:[#allocation14 + $0xb0] sm:$0xff]
          %v1563 = vld [vmem:[#allocation14 + $0xb8] sm:$0xff]
          %v1564 = vld [vmem:[#allocation14 + $0xc0] sm:$0xff]
          %v1565 = vld [vmem:[#allocation14 + $0xc8] sm:$0xff]
          %v1566 = vld [vmem:[#allocation14 + $0xd0] sm:$0xff]
          %v1567 = vld [vmem:[#allocation14 + $0xd8] sm:$0xff]
          %v1568 = vld [vmem:[#allocation14 + $0xe0] sm:$0xff]
          %v1569 = vld [vmem:[#allocation14 + $0xe8] sm:$0xff]
          %v1570 = vld [vmem:[#allocation14 + $0xf0] sm:$0xff]
          %v1571 = vld [vmem:[#allocation14 + $0xf8] sm:$0xff]
          %v1572 = vld [vmem:[#allocation14 + $0x100] sm:$0xff]
          %v1573 = vld [vmem:[#allocation14 + $0x108] sm:$0xff]
          %v1574 = vld [vmem:[#allocation14 + $0x110] sm:$0xff]
          %v1575 = vld [vmem:[#allocation14 + $0x118] sm:$0xff]
          %v1576 = vld [vmem:[#allocation14 + $0x120] sm:$0xff]
          %v1577 = vld [vmem:[#allocation14 + $0x128] sm:$0xff]
          %v1578 = vld [vmem:[#allocation14 + $0x130] sm:$0xff]
          %v1579 = vld [vmem:[#allocation14 + $0x138] sm:$0xff]
          %v1580 = vld [vmem:[#allocation14 + $0x140] sm:$0xff]
          %v1581 = vld [vmem:[#allocation14 + $0x148] sm:$0xff]
          %v1582 = vld [vmem:[#allocation14 + $0x150] sm:$0xff]
          %v1583 = vld [vmem:[#allocation14 + $0x158] sm:$0xff]
          %v1584 = vld [vmem:[#allocation14 + $0x160] sm:$0xff]
          %v1585 = vld [vmem:[#allocation14 + $0x168] sm:$0xff]
          %v1586 = vld [vmem:[#allocation14 + $0x170] sm:$0xff]
          %v1587 = vld [vmem:[#allocation14 + $0x178] sm:$0xff]
          %v1588 = vld [vmem:[#allocation14 + $0x180] sm:$0xff]
          %v1589 = vld [vmem:[#allocation14 + $0x188] sm:$0xff]
          %v1590 = vld [vmem:[#allocation14 + $0x190] sm:$0xff]
          %v1591 = vld [vmem:[#allocation14 + $0x198] sm:$0xff]
          %v1592 = vld [vmem:[#allocation14 + $0x1a0] sm:$0xff]
          %v1593 = vld [vmem:[#allocation14 + $0x1a8] sm:$0xff]
          %v1594 = vld [vmem:[#allocation14 + $0x1b0] sm:$0xff]
          %v1595 = vld [vmem:[#allocation14 + $0x1b8] sm:$0xff]
          %v1596 = vld [vmem:[#allocation14 + $0x1c0] sm:$0xff]
          %v1597 = vld [vmem:[#allocation14 + $0x1c8] sm:$0xff]
          %v1598 = vld [vmem:[#allocation14 + $0x1d0] sm:$0xff]
          %v1599 = vld [vmem:[#allocation14 + $0x1d8] sm:$0xff]
          %v1600 = vld [vmem:[#allocation14 + $0x1e0] sm:$0xff]
          %v1601 = vld [vmem:[#allocation14 + $0x1e8] sm:$0xff]
          %v1602 = vld [vmem:[#allocation14 + $0x1f0] sm:$0xff]
          %v1603 = vld [vmem:[#allocation14 + $0x1f8] sm:$0xff]
          %v1604 = vld [vmem:[#allocation14 + $0x200] sm:$0xff]
          %v1605 = vld [vmem:[#allocation14 + $0x208] sm:$0xff]
          %v1606 = vld [vmem:[#allocation14 + $0x210] sm:$0xff]
          %v1607 = vld [vmem:[#allocation14 + $0x218] sm:$0xff]
          %v1608 = vld [vmem:[#allocation14 + $0x220] sm:$0xff]
          %v1609 = vld [vmem:[#allocation14 + $0x228] sm:$0xff]
          %v1610 = vld [vmem:[#allocation14 + $0x230] sm:$0xff]
          %v1611 = vld [vmem:[#allocation14 + $0x238] sm:$0xff]
          %v1612 = vld [vmem:[#allocation14 + $0x240] sm:$0xff]
          %v1613 = vld [vmem:[#allocation14 + $0x248] sm:$0xff]
          %v1614 = vld [vmem:[#allocation14 + $0x250] sm:$0xff]
          %v1615 = vld [vmem:[#allocation14 + $0x258] sm:$0xff]
          %v1616 = vld [vmem:[#allocation14 + $0x260] sm:$0xff]
          %v1617 = vld [vmem:[#allocation14 + $0x268] sm:$0xff]
          %v1618 = vld [vmem:[#allocation14 + $0x270] sm:$0xff]
          %v1619 = vld [vmem:[#allocation14 + $0x278] sm:$0xff]
          %v1620 = vld [vmem:[#allocation14 + $0x280] sm:$0xff]
          %v1621 = vld [vmem:[#allocation14 + $0x288] sm:$0xff]
          %v1622 = vld [vmem:[#allocation14 + $0x290] sm:$0xff]
          %v1623 = vld [vmem:[#allocation14 + $0x298] sm:$0xff]
          %v1624 = vld [vmem:[#allocation14 + $0x2a0] sm:$0xff]
          %v1625 = vld [vmem:[#allocation14 + $0x2a8] sm:$0xff]
          %v1626 = vld [vmem:[#allocation14 + $0x2b0] sm:$0xff]
          %v1627 = vld [vmem:[#allocation14 + $0x2b8] sm:$0xff]
          %v1628 = vld [vmem:[#allocation14 + $0x2c0] sm:$0xff]
          %v1629 = vld [vmem:[#allocation14 + $0x2c8] sm:$0xff]
          %v1630 = vld [vmem:[#allocation14 + $0x2d0] sm:$0xff]
          %v1631 = vld [vmem:[#allocation14 + $0x2d8] sm:$0xff]
          %v1632 = vld [vmem:[#allocation14 + $0x2e0] sm:$0xff]
          %v1633 = vld [vmem:[#allocation14 + $0x2e8] sm:$0xff]
          %v1634 = vld [vmem:[#allocation14 + $0x2f0] sm:$0xff]
          %v1635 = vld [vmem:[#allocation14 + $0x2f8] sm:$0xff]
          %v1636 = vld [vmem:[#allocation14 + $0x300] sm:$0xff]
          %v1637 = vld [vmem:[#allocation14 + $0x308] sm:$0xff]
          %v1638 = vld [vmem:[#allocation14 + $0x310] sm:$0xff]
          %v1639 = vld [vmem:[#allocation14 + $0x318] sm:$0xff]
          %v1640 = vld [vmem:[#allocation14 + $0x320] sm:$0xff]
          %v1641 = vld [vmem:[#allocation14 + $0x328] sm:$0xff]
          %v1642 = vld [vmem:[#allocation14 + $0x330] sm:$0xff]
          %v1643 = vld [vmem:[#allocation14 + $0x338] sm:$0xff]
          %v1644 = vld [vmem:[#allocation14 + $0x340] sm:$0xff]
          %v1645 = vld [vmem:[#allocation14 + $0x348] sm:$0xff]
          %v1646 = vld [vmem:[#allocation14 + $0x350] sm:$0xff]
          %v1647 = vld [vmem:[#allocation14 + $0x358] sm:$0xff]
          %v1648 = vld [vmem:[#allocation14 + $0x360] sm:$0xff]
          %v1649 = vld [vmem:[#allocation14 + $0x368] sm:$0xff]
          %v1650 = vld [vmem:[#allocation14 + $0x370] sm:$0xff]
          %v1651 = vld [vmem:[#allocation14 + $0x378] sm:$0xff]
          %v1652 = vld [vmem:[#allocation14 + $0x380] sm:$0xff]
          %v1653 = vld [vmem:[#allocation14 + $0x388] sm:$0xff]
          %v1654 = vld [vmem:[#allocation14 + $0x390] sm:$0xff]
          %v1655 = vld [vmem:[#allocation14 + $0x398] sm:$0xff]
          %v1656 = vld [vmem:[#allocation14 + $0x3a0] sm:$0xff]
          %v1657 = vld [vmem:[#allocation14 + $0x3a8] sm:$0xff]
          %v1658 = vld [vmem:[#allocation14 + $0x3b0] sm:$0xff]
          %v1659 = vld [vmem:[#allocation14 + $0x3b8] sm:$0xff]
          %v1660 = vld [vmem:[#allocation14 + $0x3c0] sm:$0xff]
          %v1661 = vld [vmem:[#allocation14 + $0x3c8] sm:$0xff]
          %v1662 = vld [vmem:[#allocation14 + $0x3d0] sm:$0xff]
          %v1663 = vld [vmem:[#allocation14 + $0x3d8] sm:$0xff]
          %v1664 = vld [vmem:[#allocation14 + $0x3e0] sm:$0xff]
          %v1665 = vld [vmem:[#allocation14 + $0x3e8] sm:$0xff]
          %v1666 = vld [vmem:[#allocation14 + $0x3f0] sm:$0xff]
          %v1667 = vld [vmem:[#allocation14 + $0x3f8] sm:$0xff]
          %v1668 = vld [vmem:[#allocation15] sm:$0x3]
          %v1797 = vunpack.c.l.b16 %v1540
          %v1798 = vunpack.c.h.b16 %v1540
          %v1799 = vunpack.c.l.b16 %v1541
          %v1800 = vunpack.c.h.b16 %v1541
          %v1801 = vunpack.c.l.b16 %v1542
          %v1802 = vunpack.c.h.b16 %v1542
          %v1803 = vunpack.c.l.b16 %v1543
          %v1804 = vunpack.c.h.b16 %v1543
          %v1805 = vunpack.c.l.b16 %v1544
          %v1806 = vunpack.c.h.b16 %v1544
          %v1807 = vunpack.c.l.b16 %v1545
          %v1808 = vunpack.c.h.b16 %v1545
          %v1809 = vunpack.c.l.b16 %v1546
          %v1810 = vunpack.c.h.b16 %v1546
          %v1811 = vunpack.c.l.b16 %v1547
          %v1812 = vunpack.c.h.b16 %v1547
          %v1813 = vunpack.c.l.b16 %v1548
          %v1814 = vunpack.c.h.b16 %v1548
          %v1815 = vunpack.c.l.b16 %v1549
          %v1816 = vunpack.c.h.b16 %v1549
          %v1817 = vunpack.c.l.b16 %v1550
          %v1818 = vunpack.c.h.b16 %v1550
          %v1819 = vunpack.c.l.b16 %v1551
          %v1820 = vunpack.c.h.b16 %v1551
          %v1821 = vunpack.c.l.b16 %v1552
          %v1822 = vunpack.c.h.b16 %v1552
          %v1823 = vunpack.c.l.b16 %v1553
          %v1824 = vunpack.c.h.b16 %v1553
          %v1825 = vunpack.c.l.b16 %v1554
          %v1826 = vunpack.c.h.b16 %v1554
          %v1827 = vunpack.c.l.b16 %v1555
          %v1828 = vunpack.c.h.b16 %v1555
          %v1829 = vunpack.c.l.b16 %v1556
          %v1830 = vunpack.c.h.b16 %v1556
          %v1831 = vunpack.c.l.b16 %v1557
          %v1832 = vunpack.c.h.b16 %v1557
          %v1833 = vunpack.c.l.b16 %v1558
          %v1834 = vunpack.c.h.b16 %v1558
          %v1835 = vunpack.c.l.b16 %v1559
          %v1836 = vunpack.c.h.b16 %v1559
          %v1837 = vunpack.c.l.b16 %v1560
          %v1838 = vunpack.c.h.b16 %v1560
          %v1839 = vunpack.c.l.b16 %v1561
          %v1840 = vunpack.c.h.b16 %v1561
          %v1841 = vunpack.c.l.b16 %v1562
          %v1842 = vunpack.c.h.b16 %v1562
          %v1843 = vunpack.c.l.b16 %v1563
          %v1844 = vunpack.c.h.b16 %v1563
          %v1845 = vunpack.c.l.b16 %v1564
          %v1846 = vunpack.c.h.b16 %v1564
          %v1847 = vunpack.c.l.b16 %v1565
          %v1848 = vunpack.c.h.b16 %v1565
          %v1849 = vunpack.c.l.b16 %v1566
          %v1850 = vunpack.c.h.b16 %v1566
          %v1851 = vunpack.c.l.b16 %v1567
          %v1852 = vunpack.c.h.b16 %v1567
          %v1853 = vunpack.c.l.b16 %v1568
          %v1854 = vunpack.c.h.b16 %v1568
          %v1855 = vunpack.c.l.b16 %v1569
          %v1856 = vunpack.c.h.b16 %v1569
          %v1857 = vunpack.c.l.b16 %v1570
          %v1858 = vunpack.c.h.b16 %v1570
          %v1859 = vunpack.c.l.b16 %v1571
          %v1860 = vunpack.c.h.b16 %v1571
          %v1861 = vunpack.c.l.b16 %v1572
          %v1862 = vunpack.c.h.b16 %v1572
          %v1863 = vunpack.c.l.b16 %v1573
          %v1864 = vunpack.c.h.b16 %v1573
          %v1865 = vunpack.c.l.b16 %v1574
          %v1866 = vunpack.c.h.b16 %v1574
          %v1867 = vunpack.c.l.b16 %v1575
          %v1868 = vunpack.c.h.b16 %v1575
          %v1869 = vunpack.c.l.b16 %v1576
          %v1870 = vunpack.c.h.b16 %v1576
          %v1871 = vunpack.c.l.b16 %v1577
          %v1872 = vunpack.c.h.b16 %v1577
          %v1873 = vunpack.c.l.b16 %v1578
          %v1874 = vunpack.c.h.b16 %v1578
          %v1875 = vunpack.c.l.b16 %v1579
          %v1876 = vunpack.c.h.b16 %v1579
          %v1877 = vunpack.c.l.b16 %v1580
          %v1878 = vunpack.c.h.b16 %v1580
          %v1879 = vunpack.c.l.b16 %v1581
          %v1880 = vunpack.c.h.b16 %v1581
          %v1881 = vunpack.c.l.b16 %v1582
          %v1882 = vunpack.c.h.b16 %v1582
          %v1883 = vunpack.c.l.b16 %v1583
          %v1884 = vunpack.c.h.b16 %v1583
          %v1885 = vunpack.c.l.b16 %v1584
          %v1886 = vunpack.c.h.b16 %v1584
          %v1887 = vunpack.c.l.b16 %v1585
          %v1888 = vunpack.c.h.b16 %v1585
          %v1889 = vunpack.c.l.b16 %v1586
          %v1890 = vunpack.c.h.b16 %v1586
          %v1891 = vunpack.c.l.b16 %v1587
          %v1892 = vunpack.c.h.b16 %v1587
          %v1893 = vunpack.c.l.b16 %v1588
          %v1894 = vunpack.c.h.b16 %v1588
          %v1895 = vunpack.c.l.b16 %v1589
          %v1896 = vunpack.c.h.b16 %v1589
          %v1897 = vunpack.c.l.b16 %v1590
          %v1898 = vunpack.c.h.b16 %v1590
          %v1899 = vunpack.c.l.b16 %v1591
          %v1900 = vunpack.c.h.b16 %v1591
          %v1901 = vunpack.c.l.b16 %v1592
          %v1902 = vunpack.c.h.b16 %v1592
          %v1903 = vunpack.c.l.b16 %v1593
          %v1904 = vunpack.c.h.b16 %v1593
          %v1905 = vunpack.c.l.b16 %v1594
          %v1906 = vunpack.c.h.b16 %v1594
          %v1907 = vunpack.c.l.b16 %v1595
          %v1908 = vunpack.c.h.b16 %v1595
          %v1909 = vunpack.c.l.b16 %v1596
          %v1910 = vunpack.c.h.b16 %v1596
          %v1911 = vunpack.c.l.b16 %v1597
          %v1912 = vunpack.c.h.b16 %v1597
          %v1913 = vunpack.c.l.b16 %v1598
          %v1914 = vunpack.c.h.b16 %v1598
          %v1915 = vunpack.c.l.b16 %v1599
          %v1916 = vunpack.c.h.b16 %v1599
          %v1917 = vunpack.c.l.b16 %v1600
          %v1918 = vunpack.c.h.b16 %v1600
          %v1919 = vunpack.c.l.b16 %v1601
          %v1920 = vunpack.c.h.b16 %v1601
          %v1921 = vunpack.c.l.b16 %v1602
          %v1922 = vunpack.c.h.b16 %v1602
          %v1923 = vunpack.c.l.b16 %v1603
          %v1924 = vunpack.c.h.b16 %v1603
          %v1925 = vunpack.c.l.b16 %v1604
          %v1926 = vunpack.c.h.b16 %v1604
          %v1927 = vunpack.c.l.b16 %v1605
          %v1928 = vunpack.c.h.b16 %v1605
          %v1929 = vunpack.c.l.b16 %v1606
          %v1930 = vunpack.c.h.b16 %v1606
          %v1931 = vunpack.c.l.b16 %v1607
          %v1932 = vunpack.c.h.b16 %v1607
          %v1933 = vunpack.c.l.b16 %v1608
          %v1934 = vunpack.c.h.b16 %v1608
          %v1935 = vunpack.c.l.b16 %v1609
          %v1936 = vunpack.c.h.b16 %v1609
          %v1937 = vunpack.c.l.b16 %v1610
          %v1938 = vunpack.c.h.b16 %v1610
          %v1939 = vunpack.c.l.b16 %v1611
          %v1940 = vunpack.c.h.b16 %v1611
          %v1941 = vunpack.c.l.b16 %v1612
          %v1942 = vunpack.c.h.b16 %v1612
          %v1943 = vunpack.c.l.b16 %v1613
          %v1944 = vunpack.c.h.b16 %v1613
          %v1945 = vunpack.c.l.b16 %v1614
          %v1946 = vunpack.c.h.b16 %v1614
          %v1947 = vunpack.c.l.b16 %v1615
          %v1948 = vunpack.c.h.b16 %v1615
          %v1949 = vunpack.c.l.b16 %v1616
          %v1950 = vunpack.c.h.b16 %v1616
          %v1951 = vunpack.c.l.b16 %v1617
          %v1952 = vunpack.c.h.b16 %v1617
          %v1953 = vunpack.c.l.b16 %v1618
          %v1954 = vunpack.c.h.b16 %v1618
          %v1955 = vunpack.c.l.b16 %v1619
          %v1956 = vunpack.c.h.b16 %v1619
          %v1957 = vunpack.c.l.b16 %v1620
          %v1958 = vunpack.c.h.b16 %v1620
          %v1959 = vunpack.c.l.b16 %v1621
          %v1960 = vunpack.c.h.b16 %v1621
          %v1961 = vunpack.c.l.b16 %v1622
          %v1962 = vunpack.c.h.b16 %v1622
          %v1963 = vunpack.c.l.b16 %v1623
          %v1964 = vunpack.c.h.b16 %v1623
          %v1965 = vunpack.c.l.b16 %v1624
          %v1966 = vunpack.c.h.b16 %v1624
          %v1967 = vunpack.c.l.b16 %v1625
          %v1968 = vunpack.c.h.b16 %v1625
          %v1969 = vunpack.c.l.b16 %v1626
          %v1970 = vunpack.c.h.b16 %v1626
          %v1971 = vunpack.c.l.b16 %v1627
          %v1972 = vunpack.c.h.b16 %v1627
          %v1973 = vunpack.c.l.b16 %v1628
          %v1974 = vunpack.c.h.b16 %v1628
          %v1975 = vunpack.c.l.b16 %v1629
          %v1976 = vunpack.c.h.b16 %v1629
          %v1977 = vunpack.c.l.b16 %v1630
          %v1978 = vunpack.c.h.b16 %v1630
          %v1979 = vunpack.c.l.b16 %v1631
          %v1980 = vunpack.c.h.b16 %v1631
          %v1981 = vunpack.c.l.b16 %v1632
          %v1982 = vunpack.c.h.b16 %v1632
          %v1983 = vunpack.c.l.b16 %v1633
          %v1984 = vunpack.c.h.b16 %v1633
          %v1985 = vunpack.c.l.b16 %v1634
          %v1986 = vunpack.c.h.b16 %v1634
          %v1987 = vunpack.c.l.b16 %v1635
          %v1988 = vunpack.c.h.b16 %v1635
          %v1989 = vunpack.c.l.b16 %v1636
          %v1990 = vunpack.c.h.b16 %v1636
          %v1991 = vunpack.c.l.b16 %v1637
          %v1992 = vunpack.c.h.b16 %v1637
          %v1993 = vunpack.c.l.b16 %v1638
          %v1994 = vunpack.c.h.b16 %v1638
          %v1995 = vunpack.c.l.b16 %v1639
          %v1996 = vunpack.c.h.b16 %v1639
          %v1997 = vunpack.c.l.b16 %v1640
          %v1998 = vunpack.c.h.b16 %v1640
          %v1999 = vunpack.c.l.b16 %v1641
          %v2000 = vunpack.c.h.b16 %v1641
          %v2001 = vunpack.c.l.b16 %v1642
          %v2002 = vunpack.c.h.b16 %v1642
          %v2003 = vunpack.c.l.b16 %v1643
          %v2004 = vunpack.c.h.b16 %v1643
          %v2005 = vunpack.c.l.b16 %v1644
          %v2006 = vunpack.c.h.b16 %v1644
          %v2007 = vunpack.c.l.b16 %v1645
          %v2008 = vunpack.c.h.b16 %v1645
          %v2009 = vunpack.c.l.b16 %v1646
          %v2010 = vunpack.c.h.b16 %v1646
          %v2011 = vunpack.c.l.b16 %v1647
          %v2012 = vunpack.c.h.b16 %v1647
          %v2013 = vunpack.c.l.b16 %v1648
          %v2014 = vunpack.c.h.b16 %v1648
          %v2015 = vunpack.c.l.b16 %v1649
          %v2016 = vunpack.c.h.b16 %v1649
          %v2017 = vunpack.c.l.b16 %v1650
          %v2018 = vunpack.c.h.b16 %v1650
          %v2019 = vunpack.c.l.b16 %v1651
          %v2020 = vunpack.c.h.b16 %v1651
          %v2021 = vunpack.c.l.b16 %v1652
          %v2022 = vunpack.c.h.b16 %v1652
          %v2023 = vunpack.c.l.b16 %v1653
          %v2024 = vunpack.c.h.b16 %v1653
          %v2025 = vunpack.c.l.b16 %v1654
          %v2026 = vunpack.c.h.b16 %v1654
          %v2027 = vunpack.c.l.b16 %v1655
          %v2028 = vunpack.c.h.b16 %v1655
          %v2029 = vunpack.c.l.b16 %v1656
          %v2030 = vunpack.c.h.b16 %v1656
          %v2031 = vunpack.c.l.b16 %v1657
          %v2032 = vunpack.c.h.b16 %v1657
          %v2033 = vunpack.c.l.b16 %v1658
          %v2034 = vunpack.c.h.b16 %v1658
          %v2035 = vunpack.c.l.b16 %v1659
          %v2036 = vunpack.c.h.b16 %v1659
          %v2037 = vunpack.c.l.b16 %v1660
          %v2038 = vunpack.c.h.b16 %v1660
          %v2039 = vunpack.c.l.b16 %v1661
          %v2040 = vunpack.c.h.b16 %v1661
          %v2041 = vunpack.c.l.b16 %v1662
          %v2042 = vunpack.c.h.b16 %v1662
          %v2043 = vunpack.c.l.b16 %v1663
          %v2044 = vunpack.c.h.b16 %v1663
          %v2045 = vunpack.c.l.b16 %v1664
          %v2046 = vunpack.c.h.b16 %v1664
          %v2047 = vunpack.c.l.b16 %v1665
          %v2048 = vunpack.c.h.b16 %v1665
          %v2049 = vunpack.c.l.b16 %v1666
          %v2050 = vunpack.c.h.b16 %v1666
          %v2051 = vunpack.c.l.b16 %v1667
          %v2052 = vunpack.c.h.b16 %v1667
          %v2053 = vpack.c.b16 %v1799, %v1797
          %v2054 = vpack.c.b16 %v1800, %v1798
          %v2055 = vpack.c.b16 %v1803, %v1801
          %v2056 = vpack.c.b16 %v1804, %v1802
          %v2057 = vpack.c.b16 %v1807, %v1805
          %v2058 = vpack.c.b16 %v1808, %v1806
          %v2059 = vpack.c.b16 %v1811, %v1809
          %v2060 = vpack.c.b16 %v1812, %v1810
          %v2061 = vpack.c.b16 %v1815, %v1813
          %v2062 = vpack.c.b16 %v1816, %v1814
          %v2063 = vpack.c.b16 %v1819, %v1817
          %v2064 = vpack.c.b16 %v1820, %v1818
          %v2065 = vpack.c.b16 %v1823, %v1821
          %v2066 = vpack.c.b16 %v1824, %v1822
          %v2067 = vpack.c.b16 %v1827, %v1825
          %v2068 = vpack.c.b16 %v1828, %v1826
          %v2069 = vpack.c.b16 %v1831, %v1829
          %v2070 = vpack.c.b16 %v1832, %v1830
          %v2071 = vpack.c.b16 %v1835, %v1833
          %v2072 = vpack.c.b16 %v1836, %v1834
          %v2073 = vpack.c.b16 %v1839, %v1837
          %v2074 = vpack.c.b16 %v1840, %v1838
          %v2075 = vpack.c.b16 %v1843, %v1841
          %v2076 = vpack.c.b16 %v1844, %v1842
          %v2077 = vpack.c.b16 %v1847, %v1845
          %v2078 = vpack.c.b16 %v1848, %v1846
          %v2079 = vpack.c.b16 %v1851, %v1849
          %v2080 = vpack.c.b16 %v1852, %v1850
          %v2081 = vpack.c.b16 %v1855, %v1853
          %v2082 = vpack.c.b16 %v1856, %v1854
          %v2083 = vpack.c.b16 %v1859, %v1857
          %v2084 = vpack.c.b16 %v1860, %v1858
          %v2085 = vpack.c.b16 %v1863, %v1861
          %v2086 = vpack.c.b16 %v1864, %v1862
          %v2087 = vpack.c.b16 %v1867, %v1865
          %v2088 = vpack.c.b16 %v1868, %v1866
          %v2089 = vpack.c.b16 %v1871, %v1869
          %v2090 = vpack.c.b16 %v1872, %v1870
          %v2091 = vpack.c.b16 %v1875, %v1873
          %v2092 = vpack.c.b16 %v1876, %v1874
          %v2093 = vpack.c.b16 %v1879, %v1877
          %v2094 = vpack.c.b16 %v1880, %v1878
          %v2095 = vpack.c.b16 %v1883, %v1881
          %v2096 = vpack.c.b16 %v1884, %v1882
          %v2097 = vpack.c.b16 %v1887, %v1885
          %v2098 = vpack.c.b16 %v1888, %v1886
          %v2099 = vpack.c.b16 %v1891, %v1889
          %v2100 = vpack.c.b16 %v1892, %v1890
          %v2101 = vpack.c.b16 %v1895, %v1893
          %v2102 = vpack.c.b16 %v1896, %v1894
          %v2103 = vpack.c.b16 %v1899, %v1897
          %v2104 = vpack.c.b16 %v1900, %v1898
          %v2105 = vpack.c.b16 %v1903, %v1901
          %v2106 = vpack.c.b16 %v1904, %v1902
          %v2107 = vpack.c.b16 %v1907, %v1905
          %v2108 = vpack.c.b16 %v1908, %v1906
          %v2109 = vpack.c.b16 %v1911, %v1909
          %v2110 = vpack.c.b16 %v1912, %v1910
          %v2111 = vpack.c.b16 %v1915, %v1913
          %v2112 = vpack.c.b16 %v1916, %v1914
          %v2113 = vpack.c.b16 %v1919, %v1917
          %v2114 = vpack.c.b16 %v1920, %v1918
          %v2115 = vpack.c.b16 %v1923, %v1921
          %v2116 = vpack.c.b16 %v1924, %v1922
          %v2117 = vpack.c.b16 %v1927, %v1925
          %v2118 = vpack.c.b16 %v1928, %v1926
          %v2119 = vpack.c.b16 %v1931, %v1929
          %v2120 = vpack.c.b16 %v1932, %v1930
          %v2121 = vpack.c.b16 %v1935, %v1933
          %v2122 = vpack.c.b16 %v1936, %v1934
          %v2123 = vpack.c.b16 %v1939, %v1937
          %v2124 = vpack.c.b16 %v1940, %v1938
          %v2125 = vpack.c.b16 %v1943, %v1941
          %v2126 = vpack.c.b16 %v1944, %v1942
          %v2127 = vpack.c.b16 %v1947, %v1945
          %v2128 = vpack.c.b16 %v1948, %v1946
          %v2129 = vpack.c.b16 %v1951, %v1949
          %v2130 = vpack.c.b16 %v1952, %v1950
          %v2131 = vpack.c.b16 %v1955, %v1953
          %v2132 = vpack.c.b16 %v1956, %v1954
          %v2133 = vpack.c.b16 %v1959, %v1957
          %v2134 = vpack.c.b16 %v1960, %v1958
          %v2135 = vpack.c.b16 %v1963, %v1961
          %v2136 = vpack.c.b16 %v1964, %v1962
          %v2137 = vpack.c.b16 %v1967, %v1965
          %v2138 = vpack.c.b16 %v1968, %v1966
          %v2139 = vpack.c.b16 %v1971, %v1969
          %v2140 = vpack.c.b16 %v1972, %v1970
          %v2141 = vpack.c.b16 %v1975, %v1973
          %v2142 = vpack.c.b16 %v1976, %v1974
          %v2143 = vpack.c.b16 %v1979, %v1977
          %v2144 = vpack.c.b16 %v1980, %v1978
          %v2145 = vpack.c.b16 %v1983, %v1981
          %v2146 = vpack.c.b16 %v1984, %v1982
          %v2147 = vpack.c.b16 %v1987, %v1985
          %v2148 = vpack.c.b16 %v1988, %v1986
          %v2149 = vpack.c.b16 %v1991, %v1989
          %v2150 = vpack.c.b16 %v1992, %v1990
          %v2151 = vpack.c.b16 %v1995, %v1993
          %v2152 = vpack.c.b16 %v1996, %v1994
          %v2153 = vpack.c.b16 %v1999, %v1997
          %v2154 = vpack.c.b16 %v2000, %v1998
          %v2155 = vpack.c.b16 %v2003, %v2001
          %v2156 = vpack.c.b16 %v2004, %v2002
          %v2157 = vpack.c.b16 %v2007, %v2005
          %v2158 = vpack.c.b16 %v2008, %v2006
          %v2159 = vpack.c.b16 %v2011, %v2009
          %v2160 = vpack.c.b16 %v2012, %v2010
          %v2161 = vpack.c.b16 %v2015, %v2013
          %v2162 = vpack.c.b16 %v2016, %v2014
          %v2163 = vpack.c.b16 %v2019, %v2017
          %v2164 = vpack.c.b16 %v2020, %v2018
          %v2165 = vpack.c.b16 %v2023, %v2021
          %v2166 = vpack.c.b16 %v2024, %v2022
          %v2167 = vpack.c.b16 %v2027, %v2025
          %v2168 = vpack.c.b16 %v2028, %v2026
          %v2169 = vpack.c.b16 %v2031, %v2029
          %v2170 = vpack.c.b16 %v2032, %v2030
          %v2171 = vpack.c.b16 %v2035, %v2033
          %v2172 = vpack.c.b16 %v2036, %v2034
          %v2173 = vpack.c.b16 %v2039, %v2037
          %v2174 = vpack.c.b16 %v2040, %v2038
          %v2175 = vpack.c.b16 %v2043, %v2041
          %v2176 = vpack.c.b16 %v2044, %v2042
          %v2177 = vpack.c.b16 %v2047, %v2045
          %v2178 = vpack.c.b16 %v2048, %v2046
          %v2179 = vpack.c.b16 %v2051, %v2049
          %v2180 = vpack.c.b16 %v2052, %v2050
          %v2310 = vlaneseq
          %v2311 = vshrl.u32 %v2310, 7
          %v2312 = vsub.s32 0, %v2311
          %v2313 = vrot.slane %v1668, %v2312
          %v2314 = vlaneseq
          %v2315 = vshrl.u32 %v2314, 7
          %v2316 = vsub.s32 1, %v2315
          %v2317 = vrot.slane %v1668, %v2316
          %2320 = vmatprep.subr.bf16.mxu0 %v2068
          %2321 = vmatpush1.bf16.msra.mxu0 %v2067
          %2322 = vmatprep.subr.bf16.mxu0 %v2066
          %2323 = vmatpush1.bf16.msra.mxu0 %v2065
          %2324 = vmatprep.subr.bf16.mxu0 %v2064
          %2325 = vmatpush1.bf16.msra.mxu0 %v2063
          %2326 = vmatprep.subr.bf16.mxu0 %v2062
          %2327 = vmatpush1.bf16.msra.mxu0 %v2061
          %2328 = vmatprep.subr.bf16.mxu0 %v2060
          %2329 = vmatpush1.bf16.msra.mxu0 %v2059
          %2330 = vmatprep.subr.bf16.mxu0 %v2058
          %2331 = vmatpush1.bf16.msra.mxu0 %v2057
          %2332 = vmatprep.subr.bf16.mxu0 %v2056
          %2333 = vmatpush1.bf16.msra.mxu0 %v2055
          %2334 = vmatprep.subr.bf16.mxu0 %v2054
          %2335 = vmatpush1.bf16.msra.mxu0 %v2053
          %2336 = vmatprep.subr.bf16.mxu0 %v2084
          %2337 = vmatpush2.bf16.msra.mxu0 %v2083
          %2338 = vmatprep.subr.bf16.mxu0 %v2082
          %2339 = vmatpush2.bf16.msra.mxu0 %v2081
          %2340 = vmatprep.subr.bf16.mxu0 %v2080
          %2341 = vmatpush2.bf16.msra.mxu0 %v2079
          %2342 = vmatprep.subr.bf16.mxu0 %v2078
          %2343 = vmatpush2.bf16.msra.mxu0 %v2077
          %2344 = vmatprep.subr.bf16.mxu0 %v2076
          %2345 = vmatpush2.bf16.msra.mxu0 %v2075
          %2346 = vmatprep.subr.bf16.mxu0 %v2074
          %2347 = vmatpush2.bf16.msra.mxu0 %v2073
          %2348 = vmatprep.subr.bf16.mxu0 %v2072
          %2349 = vmatpush2.bf16.msra.mxu0 %v2071
          %2350 = vmatprep.subr.bf16.mxu0 %v2070
          %2351 = vmatpush2.bf16.msra.mxu0 %v2069
          %2352 = vmatprep.mubr.bf16.mxu0 %v1533
          %2353 = vmatmul.mubr.bf16.gmra.mxu0 %v1532
          %v2354 = vpop.f32.mrf.mxu0
          %v2355 = vadd.f32 %v2313, %v2354
          %v2356 = vpop.f32.mrf.mxu0
          %v2357 = vadd.f32 %v2317, %v2356
          %v2358 = vpop.f32.mrf.mxu0
          %v2359 = vpop.f32.mrf.mxu0
          %2360 = vdwg.mxu0
          %2361 = vmatprep.subr.bf16.mxu0 %v2100
          %2362 = vmatpush1.bf16.msra.mxu0 %v2099
          %2363 = vmatprep.subr.bf16.mxu0 %v2098
          %2364 = vmatpush1.bf16.msra.mxu0 %v2097
          %2365 = vmatprep.subr.bf16.mxu0 %v2096
          %2366 = vmatpush1.bf16.msra.mxu0 %v2095
          %2367 = vmatprep.subr.bf16.mxu0 %v2094
          %2368 = vmatpush1.bf16.msra.mxu0 %v2093
          %2369 = vmatprep.subr.bf16.mxu0 %v2092
          %2370 = vmatpush1.bf16.msra.mxu0 %v2091
          %2371 = vmatprep.subr.bf16.mxu0 %v2090
          %2372 = vmatpush1.bf16.msra.mxu0 %v2089
          %2373 = vmatprep.subr.bf16.mxu0 %v2088
          %2374 = vmatpush1.bf16.msra.mxu0 %v2087
          %2375 = vmatprep.subr.bf16.mxu0 %v2086
          %2376 = vmatpush1.bf16.msra.mxu0 %v2085
          %2377 = vmatprep.subr.bf16.mxu0 %v2116
          %2378 = vmatpush2.bf16.msra.mxu0 %v2115
          %2379 = vmatprep.subr.bf16.mxu0 %v2114
          %2380 = vmatpush2.bf16.msra.mxu0 %v2113
          %2381 = vmatprep.subr.bf16.mxu0 %v2112
          %2382 = vmatpush2.bf16.msra.mxu0 %v2111
          %2383 = vmatprep.subr.bf16.mxu0 %v2110
          %2384 = vmatpush2.bf16.msra.mxu0 %v2109
          %2385 = vmatprep.subr.bf16.mxu0 %v2108
          %2386 = vmatpush2.bf16.msra.mxu0 %v2107
          %2387 = vmatprep.subr.bf16.mxu0 %v2106
          %2388 = vmatpush2.bf16.msra.mxu0 %v2105
          %2389 = vmatprep.subr.bf16.mxu0 %v2104
          %2390 = vmatpush2.bf16.msra.mxu0 %v2103
          %2391 = vmatprep.subr.bf16.mxu0 %v2102
          %2392 = vmatpush2.bf16.msra.mxu0 %v2101
          %2393 = vmatprep.mubr.bf16.mxu0 %v1535
          %2394 = vmatmul.mubr.bf16.gmra.mxu0 %v1534
          %v2395 = vpop.f32.mrf.mxu0
          %v2396 = vadd.f32 %v2355, %v2395
          %v2397 = vpop.f32.mrf.mxu0
          %v2398 = vadd.f32 %v2357, %v2397
          %v2399 = vpop.f32.mrf.mxu0
          %v2400 = vpop.f32.mrf.mxu0
          %2401 = vdwg.mxu0
          %2402 = vmatprep.subr.bf16.mxu0 %v2132
          %2403 = vmatpush1.bf16.msra.mxu0 %v2131
          %2404 = vmatprep.subr.bf16.mxu0 %v2130
          %2405 = vmatpush1.bf16.msra.mxu0 %v2129
          %2406 = vmatprep.subr.bf16.mxu0 %v2128
          %2407 = vmatpush1.bf16.msra.mxu0 %v2127
          %2408 = vmatprep.subr.bf16.mxu0 %v2126
          %2409 = vmatpush1.bf16.msra.mxu0 %v2125
          %2410 = vmatprep.subr.bf16.mxu0 %v2124
          %2411 = vmatpush1.bf16.msra.mxu0 %v2123
          %2412 = vmatprep.subr.bf16.mxu0 %v2122
          %2413 = vmatpush1.bf16.msra.mxu0 %v2121
          %2414 = vmatprep.subr.bf16.mxu0 %v2120
          %2415 = vmatpush1.bf16.msra.mxu0 %v2119
          %2416 = vmatprep.subr.bf16.mxu0 %v2118
          %2417 = vmatpush1.bf16.msra.mxu0 %v2117
          %2418 = vmatprep.subr.bf16.mxu0 %v2148
          %2419 = vmatpush2.bf16.msra.mxu0 %v2147
          %2420 = vmatprep.subr.bf16.mxu0 %v2146
          %2421 = vmatpush2.bf16.msra.mxu0 %v2145
          %2422 = vmatprep.subr.bf16.mxu0 %v2144
          %2423 = vmatpush2.bf16.msra.mxu0 %v2143
          %2424 = vmatprep.subr.bf16.mxu0 %v2142
          %2425 = vmatpush2.bf16.msra.mxu0 %v2141
          %2426 = vmatprep.subr.bf16.mxu0 %v2140
          %2427 = vmatpush2.bf16.msra.mxu0 %v2139
          %2428 = vmatprep.subr.bf16.mxu0 %v2138
          %2429 = vmatpush2.bf16.msra.mxu0 %v2137
          %2430 = vmatprep.subr.bf16.mxu0 %v2136
          %2431 = vmatpush2.bf16.msra.mxu0 %v2135
          %2432 = vmatprep.subr.bf16.mxu0 %v2134
          %2433 = vmatpush2.bf16.msra.mxu0 %v2133
          %2434 = vmatprep.mubr.bf16.mxu0 %v1537
          %2435 = vmatmul.mubr.bf16.gmra.mxu0 %v1536
          %v2436 = vpop.f32.mrf.mxu0
          %v2437 = vadd.f32 %v2396, %v2436
          %v2438 = vpop.f32.mrf.mxu0
          %v2439 = vadd.f32 %v2398, %v2438
          %v2440 = vpop.f32.mrf.mxu0
          %v2441 = vpop.f32.mrf.mxu0
          %2442 = vdwg.mxu0
          %2443 = vmatprep.subr.bf16.mxu0 %v2164
          %2444 = vmatpush1.bf16.msra.mxu0 %v2163
          %2445 = vmatprep.subr.bf16.mxu0 %v2162
          %2446 = vmatpush1.bf16.msra.mxu0 %v2161
          %2447 = vmatprep.subr.bf16.mxu0 %v2160
          %2448 = vmatpush1.bf16.msra.mxu0 %v2159
          %2449 = vmatprep.subr.bf16.mxu0 %v2158
          %2450 = vmatpush1.bf16.msra.mxu0 %v2157
          %2451 = vmatprep.subr.bf16.mxu0 %v2156
          %2452 = vmatpush1.bf16.msra.mxu0 %v2155
          %2453 = vmatprep.subr.bf16.mxu0 %v2154
          %2454 = vmatpush1.bf16.msra.mxu0 %v2153
          %2455 = vmatprep.subr.bf16.mxu0 %v2152
          %2456 = vmatpush1.bf16.msra.mxu0 %v2151
          %2457 = vmatprep.subr.bf16.mxu0 %v2150
          %2458 = vmatpush1.bf16.msra.mxu0 %v2149
          %2459 = vmatprep.subr.bf16.mxu0 %v2180
          %2460 = vmatpush2.bf16.msra.mxu0 %v2179
          %2461 = vmatprep.subr.bf16.mxu0 %v2178
          %2462 = vmatpush2.bf16.msra.mxu0 %v2177
          %2463 = vmatprep.subr.bf16.mxu0 %v2176
          %2464 = vmatpush2.bf16.msra.mxu0 %v2175
          %2465 = vmatprep.subr.bf16.mxu0 %v2174
          %2466 = vmatpush2.bf16.msra.mxu0 %v2173
          %2467 = vmatprep.subr.bf16.mxu0 %v2172
          %2468 = vmatpush2.bf16.msra.mxu0 %v2171
          %2469 = vmatprep.subr.bf16.mxu0 %v2170
          %2470 = vmatpush2.bf16.msra.mxu0 %v2169
          %2471 = vmatprep.subr.bf16.mxu0 %v2168
          %2472 = vmatpush2.bf16.msra.mxu0 %v2167
          %2473 = vmatprep.subr.bf16.mxu0 %v2166
          %2474 = vmatpush2.bf16.msra.mxu0 %v2165
          %2475 = vmatprep.mubr.bf16.mxu0 %v1539
          %2476 = vmatmul.mubr.bf16.gmra.mxu0 %v1538
          %v2477 = vpop.f32.mrf.mxu0
          %v2478 = vadd.f32 %v2437, %v2477
          %v2479 = vpop.f32.mrf.mxu0
          %v2480 = vadd.f32 %v2439, %v2479
          %v2481 = vpop.f32.mrf.mxu0
          %v2482 = vpop.f32.mrf.mxu0
          %2483 = vdwg.mxu0
          %vm2484 = vcmp.ge.f32.partialorder %v2478, 0.0
          %vm2485 = vcmp.ge.f32.partialorder %v2480, 0.0
          %v2486 = vmul.f32 %v2478, 0.01
          %v2487 = vmul.f32 %v2480, 0.01
          %v2488 = vsel %vm2484, %v2478, %v2486
          %v2489 = vsel %vm2485, %v2480, %v2487
          %v2490 = vpack.c.bf16 %v2488, %v2488
          %v2491 = vpack.c.bf16 %v2489, %v2489
          %v2492 = vld [vmem:[%s9] sm:$0xf]
          %v2493 = vld [vmem:[%s9 + $0x4] sm:$0xf]
          %v2494 = vld [vmem:[%s9 + $0x8] sm:$0xf]
          %v2495 = vld [vmem:[%s9 + $0xc] sm:$0xf]
          %v2496 = vld [vmem:[%s9 + $0x10] sm:$0xf]
          %v2497 = vld [vmem:[%s9 + $0x14] sm:$0xf]
          %v2498 = vld [vmem:[%s9 + $0x18] sm:$0xf]
          %v2499 = vld [vmem:[%s9 + $0x1c] sm:$0xf]
          %v2500 = vld [vmem:[%s9 + $0x20] sm:$0xf]
          %v2501 = vld [vmem:[%s9 + $0x24] sm:$0xf]
          %v2502 = vld [vmem:[%s9 + $0x28] sm:$0xf]
          %v2503 = vld [vmem:[%s9 + $0x2c] sm:$0xf]
          %v2504 = vld [vmem:[%s9 + $0x30] sm:$0xf]
          %v2505 = vld [vmem:[%s9 + $0x34] sm:$0xf]
          %v2506 = vld [vmem:[%s9 + $0x38] sm:$0xf]
          %v2507 = vld [vmem:[%s9 + $0x3c] sm:$0xf]
          %v2508 = vld [vmem:[%s9 + $0x40] sm:$0xf]
          %v2509 = vld [vmem:[%s9 + $0x44] sm:$0xf]
          %v2510 = vld [vmem:[%s9 + $0x48] sm:$0xf]
          %v2511 = vld [vmem:[%s9 + $0x4c] sm:$0xf]
          %v2512 = vld [vmem:[%s9 + $0x50] sm:$0xf]
          %v2513 = vld [vmem:[%s9 + $0x54] sm:$0xf]
          %v2514 = vld [vmem:[%s9 + $0x58] sm:$0xf]
          %v2515 = vld [vmem:[%s9 + $0x5c] sm:$0xf]
          %v2516 = vld [vmem:[%s9 + $0x60] sm:$0xf]
          %v2517 = vld [vmem:[%s9 + $0x64] sm:$0xf]
          %v2518 = vld [vmem:[%s9 + $0x68] sm:$0xf]
          %v2519 = vld [vmem:[%s9 + $0x6c] sm:$0xf]
          %v2520 = vld [vmem:[%s9 + $0x70] sm:$0xf]
          %v2521 = vld [vmem:[%s9 + $0x74] sm:$0xf]
          %v2522 = vld [vmem:[%s9 + $0x78] sm:$0xf]
          %v2523 = vld [vmem:[%s9 + $0x7c] sm:$0xf]
          %v2524 = vld [vmem:[#allocation17] sm:$0x1]
          %v2557 = vunpack.c.l.b16 %v2492
          %v2558 = vunpack.c.l.b16 %v2493
          %v2559 = vunpack.c.l.b16 %v2494
          %v2560 = vunpack.c.l.b16 %v2495
          %v2561 = vunpack.c.l.b16 %v2496
          %v2562 = vunpack.c.l.b16 %v2497
          %v2563 = vunpack.c.l.b16 %v2498
          %v2564 = vunpack.c.l.b16 %v2499
          %v2565 = vunpack.c.l.b16 %v2500
          %v2566 = vunpack.c.l.b16 %v2501
          %v2567 = vunpack.c.l.b16 %v2502
          %v2568 = vunpack.c.l.b16 %v2503
          %v2569 = vunpack.c.l.b16 %v2504
          %v2570 = vunpack.c.l.b16 %v2505
          %v2571 = vunpack.c.l.b16 %v2506
          %v2572 = vunpack.c.l.b16 %v2507
          %v2573 = vunpack.c.l.b16 %v2508
          %v2574 = vunpack.c.l.b16 %v2509
          %v2575 = vunpack.c.l.b16 %v2510
          %v2576 = vunpack.c.l.b16 %v2511
          %v2577 = vunpack.c.l.b16 %v2512
          %v2578 = vunpack.c.l.b16 %v2513
          %v2579 = vunpack.c.l.b16 %v2514
          %v2580 = vunpack.c.l.b16 %v2515
          %v2581 = vunpack.c.l.b16 %v2516
          %v2582 = vunpack.c.l.b16 %v2517
          %v2583 = vunpack.c.l.b16 %v2518
          %v2584 = vunpack.c.l.b16 %v2519
          %v2585 = vunpack.c.l.b16 %v2520
          %v2586 = vunpack.c.l.b16 %v2521
          %v2587 = vunpack.c.l.b16 %v2522
          %v2588 = vunpack.c.l.b16 %v2523
          %v2589 = vpack.c.b16 %v2558, %v2557
          %v2590 = vpack.c.b16 %v2560, %v2559
          %v2591 = vpack.c.b16 %v2562, %v2561
          %v2592 = vpack.c.b16 %v2564, %v2563
          %v2593 = vpack.c.b16 %v2566, %v2565
          %v2594 = vpack.c.b16 %v2568, %v2567
          %v2595 = vpack.c.b16 %v2570, %v2569
          %v2596 = vpack.c.b16 %v2572, %v2571
          %v2597 = vpack.c.b16 %v2574, %v2573
          %v2598 = vpack.c.b16 %v2576, %v2575
          %v2599 = vpack.c.b16 %v2578, %v2577
          %v2600 = vpack.c.b16 %v2580, %v2579
          %v2601 = vpack.c.b16 %v2582, %v2581
          %v2602 = vpack.c.b16 %v2584, %v2583
          %v2603 = vpack.c.b16 %v2586, %v2585
          %v2604 = vpack.c.b16 %v2588, %v2587
          %2621 = vmatprep.subr.bf16.mxu0 0
          %2622 = vmatpush1.bf16.msra.mxu0 %v2596
          %2623 = vmatprep.subr.bf16.mxu0 0
          %2624 = vmatpush1.bf16.msra.mxu0 %v2595
          %2625 = vmatprep.subr.bf16.mxu0 0
          %2626 = vmatpush1.bf16.msra.mxu0 %v2594
          %2627 = vmatprep.subr.bf16.mxu0 0
          %2628 = vmatpush1.bf16.msra.mxu0 %v2593
          %2629 = vmatprep.subr.bf16.mxu0 0
          %2630 = vmatpush1.bf16.msra.mxu0 %v2592
          %2631 = vmatprep.subr.bf16.mxu0 0
          %2632 = vmatpush1.bf16.msra.mxu0 %v2591
          %2633 = vmatprep.subr.bf16.mxu0 0
          %2634 = vmatpush1.bf16.msra.mxu0 %v2590
          %2635 = vmatprep.subr.bf16.mxu0 0
          %2636 = vmatpush1.bf16.msra.mxu0 %v2589
          %2637 = vmatprep.subr.bf16.mxu0 0
          %2638 = vmatpush2.bf16.msra.mxu0 %v2604
          %2639 = vmatprep.subr.bf16.mxu0 0
          %2640 = vmatpush2.bf16.msra.mxu0 %v2603
          %2641 = vmatprep.subr.bf16.mxu0 0
          %2642 = vmatpush2.bf16.msra.mxu0 %v2602
          %2643 = vmatprep.subr.bf16.mxu0 0
          %2644 = vmatpush2.bf16.msra.mxu0 %v2601
          %2645 = vmatprep.subr.bf16.mxu0 0
          %2646 = vmatpush2.bf16.msra.mxu0 %v2600
          %2647 = vmatprep.subr.bf16.mxu0 0
          %2648 = vmatpush2.bf16.msra.mxu0 %v2599
          %2649 = vmatprep.subr.bf16.mxu0 0
          %2650 = vmatpush2.bf16.msra.mxu0 %v2598
          %2651 = vmatprep.subr.bf16.mxu0 0
          %2652 = vmatpush2.bf16.msra.mxu0 %v2597
          %2653 = vmatprep.mubr.bf16.mxu0 %v2491
          %2654 = vmatmul.mubr.bf16.gmra.mxu0 %v2490
          %v2655 = vpop.f32.mrf.mxu0
          %v2656 = vadd.f32 %v2524, %v2655
          %v2657 = vpop.f32.mrf.mxu0
          %v2658 = vpop.f32.mrf.mxu0
          %v2659 = vpop.f32.mrf.mxu0
          %2660 = vdwg.mxu0
          %vm2661 = vcmp.ge.f32.partialorder %v2656, 0.0
          %v2662 = vmul.f32 %v2656, 0.01
          %v2663 = vsel %vm2661, %v2656, %v2662
          %v2664 = vpack.c.bf16 %v2663, %v2663
          %v2665 = vld [vmem:[%s11] sm:$0xf]
          %v2666 = vld [vmem:[%s11 + $0x4] sm:$0xf]
          %v2667 = vld [vmem:[%s11 + $0x8] sm:$0xf]
          %v2668 = vld [vmem:[%s11 + $0xc] sm:$0xf]
          %v2669 = vld [vmem:[%s11 + $0x10] sm:$0xf]
          %v2670 = vld [vmem:[%s11 + $0x14] sm:$0xf]
          %v2671 = vld [vmem:[%s11 + $0x18] sm:$0xf]
          %v2672 = vld [vmem:[%s11 + $0x1c] sm:$0xf]
          %v2673 = vld [vmem:[%s11 + $0x20] sm:$0xf]
          %v2674 = vld [vmem:[%s11 + $0x24] sm:$0xf]
          %v2675 = vld [vmem:[%s11 + $0x28] sm:$0xf]
          %v2676 = vld [vmem:[%s11 + $0x2c] sm:$0xf]
          %v2677 = vld [vmem:[%s11 + $0x30] sm:$0xf]
          %v2678 = vld [vmem:[%s11 + $0x34] sm:$0xf]
          %v2679 = vld [vmem:[%s11 + $0x38] sm:$0xf]
          %v2680 = vld [vmem:[%s11 + $0x3c] sm:$0xf]
          %v2681 = vld [vmem:[%s12] sm:$0x1]
          %v2698 = vunpack.c.l.b16 %v2665
          %v2699 = vunpack.c.l.b16 %v2666
          %v2700 = vunpack.c.l.b16 %v2667
          %v2701 = vunpack.c.l.b16 %v2668
          %v2702 = vunpack.c.l.b16 %v2669
          %v2703 = vunpack.c.l.b16 %v2670
          %v2704 = vunpack.c.l.b16 %v2671
          %v2705 = vunpack.c.l.b16 %v2672
          %v2706 = vunpack.c.l.b16 %v2673
          %v2707 = vunpack.c.l.b16 %v2674
          %v2708 = vunpack.c.l.b16 %v2675
          %v2709 = vunpack.c.l.b16 %v2676
          %v2710 = vunpack.c.l.b16 %v2677
          %v2711 = vunpack.c.l.b16 %v2678
          %v2712 = vunpack.c.l.b16 %v2679
          %v2713 = vunpack.c.l.b16 %v2680
          %v2714 = vpack.c.b16 %v2699, %v2698
          %v2715 = vpack.c.b16 %v2701, %v2700
          %v2716 = vpack.c.b16 %v2703, %v2702
          %v2717 = vpack.c.b16 %v2705, %v2704
          %v2718 = vpack.c.b16 %v2707, %v2706
          %v2719 = vpack.c.b16 %v2709, %v2708
          %v2720 = vpack.c.b16 %v2711, %v2710
          %v2721 = vpack.c.b16 %v2713, %v2712
          %2730 = vmatprep.subr.bf16.mxu0 0
          %2731 = vmatpush1.bf16.msra.mxu0 %v2721
          %2732 = vmatprep.subr.bf16.mxu0 0
          %2733 = vmatpush1.bf16.msra.mxu0 %v2720
          %2734 = vmatprep.subr.bf16.mxu0 0
          %2735 = vmatpush1.bf16.msra.mxu0 %v2719
          %2736 = vmatprep.subr.bf16.mxu0 0
          %2737 = vmatpush1.bf16.msra.mxu0 %v2718
          %2738 = vmatprep.subr.bf16.mxu0 0
          %2739 = vmatpush1.bf16.msra.mxu0 %v2717
          %2740 = vmatprep.subr.bf16.mxu0 0
          %2741 = vmatpush1.bf16.msra.mxu0 %v2716
          %2742 = vmatprep.subr.bf16.mxu0 0
          %2743 = vmatpush1.bf16.msra.mxu0 %v2715
          %2744 = vmatprep.subr.bf16.mxu0 0
          %2745 = vmatpush1.bf16.msra.mxu0 %v2714
          %2746 = vmatprep.subr.bf16.mxu0 0
          %2747 = vmatpush2.bf16.msra.mxu0 0
          %2748 = vmatprep.subr.bf16.mxu0 0
          %2749 = vmatpush2.bf16.msra.mxu0 0
          %2750 = vmatprep.subr.bf16.mxu0 0
          %2751 = vmatpush2.bf16.msra.mxu0 0
          %2752 = vmatprep.subr.bf16.mxu0 0
          %2753 = vmatpush2.bf16.msra.mxu0 0
          %2754 = vmatprep.subr.bf16.mxu0 0
          %2755 = vmatpush2.bf16.msra.mxu0 0
          %2756 = vmatprep.subr.bf16.mxu0 0
          %2757 = vmatpush2.bf16.msra.mxu0 0
          %2758 = vmatprep.subr.bf16.mxu0 0
          %2759 = vmatpush2.bf16.msra.mxu0 0
          %2760 = vmatprep.subr.bf16.mxu0 0
          %2761 = vmatpush2.bf16.msra.mxu0 0
          %2762 = vmatprep.mubr.bf16.mxu0 0
          %2763 = vmatmul.mubr.bf16.gmra.mxu0 %v2664
          %v2764 = vpop.f32.mrf.mxu0
          %v2765 = vadd.f32 %v2681, %v2764
          %v2766 = vpop.f32.mrf.mxu0
          %v2767 = vpop.f32.mrf.mxu0
          %v2768 = vpop.f32.mrf.mxu0
          %2769 = vdwg.mxu0
          %vm2770 = vcmask 73728
          %2771 = vst.msk [vmem:[%s574] sm:$0x1] %vm2770, %v2765
        $region116: #{tpu_custom_call.1} parent=71 // pred_fallthru
          _
        %s2772 = sand.u32 %s332, 1
        %s2773 = scalar_lea.sflag [#allocation5], %s2772
        %s2774 = sand.u32 %s332, 1
        %s2775 = scalar_lea.vmem [#allocation18], %s2774
        // Predicated region
        $region117: #{tpu_custom_call.1} parent=71 // pred_check
          %p2776 = pneg %p342
        $region118: #{tpu_custom_call.1} parent=71 // pred_check_branch
          %2778 = sbr.rel (%p2776) target = $region120
        $region119: #{tpu_custom_call.1} parent=71 // pred_region
          %s2780 = ssub.s32 16, 16
          %2781 = vsyncadd %s2773, %s2780
          %s2782 = smul.addr %s36, 16
          %s2783 = scalar_lea.hbm %s13, %s2782
          %s2785 = sshll.u32 %s2775, 4
          %s2786 = int_to_ptr.vmem [resolvable:$true] %s2785
          %2788 = dma.vmem_to_hbm [thread:$0]  %s2786, 16, %s2783, %s2773
        $region120: #{tpu_custom_call.1} parent=71 // pred_fallthru
          _
      $region72: #{tpu_custom_call.1} parent=5 // pred_fallthru
        _
      %p2789 = scmp.le.s32.totalorder 2, %s27
      // Predicated region
      $region121: #{tpu_custom_call.1} parent=5 // pred_check
        %p2790 = pneg %p2789
      $region122: #{tpu_custom_call.1} parent=5 // pred_check_branch
        %2792 = sbr.rel (%p2790) target = $region124
      $region123: #{tpu_custom_call.1} parent=5 // pred_region
        %s2793 = ssub.s32 %s27, 2
        // Predicated region
        $region125: #{tpu_custom_call.1} parent=123 // pred_check
          %p2794 = pneg %p348
        $region126: #{tpu_custom_call.1} parent=123 // pred_check_branch
          %2796 = sbr.rel (%p2794) target = $region128
        $region127: #{tpu_custom_call.1} parent=123 // pred_region
          %s2797 = sand.u32 %s333, 1
          %s2798 = scalar_lea.sflag [#allocation5], %s2797
          %s2799 = sand.u32 %s333, 1
          %s2800 = scalar_lea.vmem [#allocation18], %s2799
          %2801 = dma.done %s2798, 16
        $region128: #{tpu_custom_call.1} parent=123 // pred_fallthru
          _
      $region124: #{tpu_custom_call.1} parent=5 // pred_fallthru
        _
    $region6: #{tpu_custom_call.1} parent=1 // loop_footer
      %s31 = sadd.s32 1, %s27
    $region7: #{tpu_custom_call.1} parent=1 // loop_footer_branch
      %26 = sbr.rel target = $region3
    $region8: #{tpu_custom_call.1} parent=1 // loop_exit
      _
    %2802 = vsyncpa [#allocation4], 1
    %s2803 = scalar_lea.sflag [#allocation4], 1
    %2804 = vsyncpa %s2803, 1
    %2805 = vsyncpa [#allocation7], 1
    %2806 = vsyncpa [#allocation10], 1
    %2807 = vsyncpa [#allocation13], 1
    %2808 = vsyncpa [#allocation16], 1
    %2809 = vsyncpa [#allocation5], 1
    %s2810 = scalar_lea.sflag [#allocation5], 1
    %2811 = vsyncpa %s2810, 1

</llo_original>
